<compile_context>
chip_gen: v7x
topology: tpu7x:2x2x1
jax: 0.10.0
libtpu: 0.0.40
codegen_flags: <defaults>
</compile_context>

<pallas_src>
import numpy as np
import jax
import jax.numpy as jnp
from jax.experimental import pallas as pl
from jax.experimental.pallas import tpu as pltpu

EPS = 1e-5            # nn.GroupNorm default eps
BF16 = jnp.bfloat16


# ---------------------------------------------------------------------------
# shared math used both inside the kernel and in the pure-JAX reference
# ---------------------------------------------------------------------------
def _gn1(x, g, b):
    """GroupNorm(num_groups=1) on a 2-D (rows, features) tensor, in f32."""
    mu = jnp.mean(x, axis=-1, keepdims=True)
    var = jnp.mean(jnp.square(x - mu), axis=-1, keepdims=True)
    return (x - mu) * jax.lax.rsqrt(var + EPS) * g + b


def _bf16_dot(x, w):
    """MXU matmul: bf16 operands, f32 accumulation (w is already bf16)."""
    return jnp.dot(x.astype(w.dtype), w, preferred_element_type=jnp.float32)


def _linear_res(x, w1, g1, b1, w2, g2, b2):
    """LinearRes(n, n, norm='GN', ng=1): two bias-free linears + GN + residual."""
    h = _bf16_dot(x, w1)
    h = jnp.maximum(_gn1(h, g1, b1), 0.0)
    h = _bf16_dot(h, w2)
    h = _gn1(h, g2, b2) + x          # residual in f32
    return jnp.maximum(h, 0.0)


# ---------------------------------------------------------------------------
# the single fused kernel
# ---------------------------------------------------------------------------
def _testnet_kernel(actors_ref, wdd_ref, wo_ref, p_ref, pred_ref, logit_ref):
    actors = actors_ref[...]                 # (N, D) f32
    p = p_ref[...]                           # (5K+13, D) f32 param slab
    N, D = actors.shape
    K, _, P2 = wo_ref.shape                  # P2 = 2 * num_preds_half

    def W(i):                                # i-th DxD bf16 weight block
        return wdd_ref[i * D:(i + 1) * D, :]

    def row(r):                              # (1, D) f32 param row
        return p[r:r + 1, :]

    RA = 5 * K                               # att rows base
    RC = RA + 7                              # cls rows base

    # ----- K prediction heads (per-mode weights -> static unroll over K) -----
    outs = []
    for k in range(K):
        h = _linear_res(actors, W(2 * k), row(5 * k + 0), row(5 * k + 1),
                        W(2 * k + 1), row(5 * k + 2), row(5 * k + 3))
        outs.append(_bf16_dot(h, wo_ref[k]) + row(5 * k + 4)[:, :P2])   # (N, 2P)
    out = jnp.concatenate(outs, axis=0)          # (K*N, 2P), mode-major
    pred_ref[...] = out.astype(pred_ref.dtype)   # ONE lane-dense full store

    # dist = agt_ctrs - dest_ctrs = -(sum over the P per-step (x, y) deltas):
    # the actor centers cancel, so no center input / HBM round-trip is needed.
    lane = jax.lax.broadcasted_iota(jnp.int32, (1, P2), 1)
    x_mask = (lane % 2 == 0).astype(jnp.float32)
    dist_x = -jnp.sum(out * x_mask, axis=-1, keepdims=True)           # (K*N, 1)
    dist_y = -jnp.sum(out * (1.0 - x_mask), axis=-1, keepdims=True)   # (K*N, 1)

    # ----- AttDest + cls head on the stacked (K*N, D) batch (weights shared
    #       across modes are applied exactly once) -----
    # nn.Linear(2, D) + ReLU: 2-deep contraction wastes the MXU -> VPU FMAs
    h = jnp.maximum(dist_x * row(RA) + dist_y * row(RA + 1) + row(RA + 2), 0.0)
    # Linear(D, D, norm='GN', ng=1) + ReLU
    h = _bf16_dot(h, W(2 * K))
    h = jnp.maximum(_gn1(h, row(RA + 3), row(RA + 4)), 0.0)
    # agt: Linear(2D, D, GN) on cat([dist_feat, agts], 1) == split matmul;
    # actors @ Wab is mode-invariant: compute once, replicate across modes.
    agt_b = _bf16_dot(actors, W(2 * K + 2))                           # (N, D)
    agt_b = jnp.concatenate([agt_b] * K, axis=0)                      # (K*N, D)
    z = _bf16_dot(h, W(2 * K + 1)) + agt_b
    feats = jnp.maximum(_gn1(z, row(RA + 5), row(RA + 6)), 0.0)       # (K*N, D)

    # cls head: LinearRes(D, D) -> Linear(D, 1), once on the stacked batch
    hc = _linear_res(feats, W(2 * K + 3), row(RC + 0), row(RC + 1),
                     W(2 * K + 4), row(RC + 2), row(RC + 3))
    logit = jnp.sum(hc * row(RC + 4), axis=-1, keepdims=True) \
        + p[RC + 5:RC + 6, 0:1]                                        # (K*N, 1)
    logit_ref[...] = logit.astype(logit_ref.dtype)                     # ONE store


def fused_forward(actors, packed):
    N, D = actors.shape
    K, _, P2 = packed["wo"].shape
    vmem = pl.BlockSpec(memory_space=pltpu.MemorySpace.VMEM)
    return pl.pallas_call(
        _testnet_kernel,
        out_shape=(jax.ShapeDtypeStruct((K * N, P2), jnp.float32),   # pred deltas
                   jax.ShapeDtypeStruct((K * N, 1), jnp.float32)),   # cls logits
        in_specs=[vmem] * 4,
        out_specs=(vmem, vmem),
    )(actors, packed["wdd"], packed["wo"], packed["p"])


# ---------------------------------------------------------------------------
# Full TestNet.forward (glue in plain JAX, compute in the one Pallas kernel)
# ---------------------------------------------------------------------------
def testnet_forward(packed, actors, actor_idcs, actor_ctrs, config):
    N, D = actors.shape
    K = config["num_test_mod"]
    P = config["num_preds_half"]

    deltas_flat, logit_col = fused_forward(actors, packed)  # (K*N,2P), (K*N,1)

    # trajectories: cumsum over steps + per-actor centers (actor_idcs are
    # contiguous in-order ranges -- the same assumption the original module
    # makes when it uses torch.cat(actor_ctrs, 0)).
    agt_ctrs = jnp.concatenate(actor_ctrs, axis=0)                   # (N, 2)
    reg = jnp.transpose(deltas_flat.reshape(K, N, P, 2), (1, 0, 2, 3))
    reg = jnp.cumsum(reg, axis=2) + agt_ctrs.reshape(N, 1, 1, 2)     # (N,K,P,2)

    cls_logits = logit_col.reshape(K, N).T                           # (N, K)
    cls = jax.nn.softmax(cls_logits, axis=1)

    # TODO(synk): softmax / descending sort / per-scene list splitting stay in
    # plain JAX (ragged, data-dependent list outputs have no kernel equivalent).
    sort_idcs = jnp.argsort(-cls, axis=1)                            # descending
    cls = jnp.take_along_axis(cls, sort_idcs, axis=1)
    gather_idx = jnp.broadcast_to(sort_idcs[:, :, None, None], (N, K, P, 2))
    reg = jnp.take_along_axis(reg, gather_idx, axis=1)

    out = {"test_cls": [], "test_ctrs": []}
    for idcs in actor_idcs:
        out["test_cls"].append(cls[idcs])
        out["test_ctrs"].append(reg[idcs])

    aux = {"deltas_flat": deltas_flat, "cls_logits": cls_logits}
    return out, aux


# ---------------------------------------------------------------------------
# deterministic parameter init (shapes follow the PyTorch __init__)
# matmul weights stored in bf16 (MXU-native), GN affine / biases in f32
# ---------------------------------------------------------------------------
def init_params(key, D, K, P):
    kit = iter(jax.random.split(key, 64))

    def lin(din, dout, dtype=BF16):
        s = 1.0 / np.sqrt(din)
        w = jax.random.uniform(next(kit), (din, dout), jnp.float32, -s, s)
        return w.astype(dtype)

    def bias(dout, din):
        s = 1.0 / np.sqrt(din)
        return jax.random.uniform(next(kit), (1, dout), jnp.float32, -s, s)

    def gamma(d):
        return 1.0 + 0.05 * jax.random.normal(next(kit), (1, d), jnp.float32)

    def beta(d):
        return 0.05 * jax.random.normal(next(kit), (1, d), jnp.float32)

    pred = {k: [] for k in ["w1", "g1", "b1", "w2", "g2", "b2", "wo", "bo"]}
    for _ in range(K):
        pred["w1"].append(lin(D, D)); pred["g1"].append(gamma(D)); pred["b1"].append(beta(D))
        pred["w2"].append(lin(D, D)); pred["g2"].append(gamma(D)); pred["b2"].append(beta(D))
        pred["wo"].append(lin(D, 2 * P)); pred["bo"].append(bias(2 * P, D))
    pred = {k: jnp.stack(v) for k, v in pred.items()}

    wagt = lin(2 * D, D)   # Linear(2*n_actor, n_actor); split for fused concat
    att = dict(wd0=lin(2, D, jnp.float32), bd0=bias(D, 2),     # VPU path: f32
               wd1=lin(D, D), gd1=gamma(D), bd1=beta(D),
               wat=wagt[:D], wab=wagt[D:], ga=gamma(D), ba=beta(D))

    cls = dict(w1=lin(D, D), g1=gamma(D), b1=beta(D),
               w2=lin(D, D), g2=gamma(D), b2=beta(D),
               wo_row=jnp.transpose(lin(D, 1, jnp.float32)),   # (1, D) f32 row
               bo=bias(1, D))                                  # (1, 1)

    return {"pred": pred, "att": att, "cls": cls}


def pack_params(params, D, K, P):
    """Pack all parameters into 3 slabs (cuts 28 tiny DMAs down to 3)."""
    pr, at, cl = params["pred"], params["att"], params["cls"]

    # bf16 DxD weight slab: [w1_k, w2_k]*K, wd1, wat, wab, cw1, cw2
    dd = []
    for k in range(K):
        dd += [pr["w1"][k], pr["w2"][k]]
    dd += [at["wd1"], at["wat"], at["wab"], cl["w1"], cl["w2"]]
    wdd = jnp.concatenate([w.astype(BF16) for w in dd], axis=0)   # ((2K+5)*D, D)

    def pad_row(r):        # pad a (1, n<=D) row out to (1, D)
        return jnp.zeros((1, D), jnp.float32).at[:, :r.shape[1]].set(r)

    # f32 gamma/beta/bias slab (one (1, D) row per parameter)
    rows = []
    for k in range(K):     # rows 5k .. 5k+4
        rows += [pr["g1"][k], pr["b1"][k], pr["g2"][k], pr["b2"][k],
                 pad_row(pr["bo"][k])]
    rows += [at["wd0"][0:1], at["wd0"][1:2], at["bd0"],            # RA .. RA+2
             at["gd1"], at["bd1"], at["ga"], at["ba"]]             # RA+3 .. RA+6
    rows += [cl["g1"], cl["b1"], cl["g2"], cl["b2"],               # RC .. RC+3
             cl["wo_row"], pad_row(cl["bo"])]                      # RC+4, RC+5
    pslab = jnp.concatenate(rows, axis=0)                          # (5K+13, D)

    return {"wdd": wdd, "wo": pr["wo"].astype(BF16), "p": pslab}


# ---------------------------------------------------------------------------
# main
# ---------------------------------------------------------------------------
if __name__ == "__main__":
    config = {"n_actor": 32, "num_test_mod": 3, "num_preds_half": 5}
    D, K, P = config["n_actor"], config["num_test_mod"], config["num_preds_half"]

    key = jax.random.PRNGKey(0)
    k_act, k_c0, k_c1, k_par = jax.random.split(key, 4)

    N = 10  # total actors across 2 "scenes"
    actors = jax.random.normal(k_act, (N, D), jnp.float32)
    actor_idcs = [jnp.arange(0, 6), jnp.arange(6, 10)]
    actor_ctrs = [2.0 * jax.random.normal(k_c0, (6, 2), jnp.float32),
                  2.0 * jax.random.normal(k_c1, (4, 2), jnp.float32)]

    params = init_params(k_par, D, K, P)
    packed = pack_params(params, D, K, P)

    out, aux = testnet_forward(packed, actors, actor_idcs, actor_ctrs, config)
    (out, aux) = jax.block_until_ready((out, aux))

    # shape sanity vs. the PyTorch forward
    assert out["test_cls"][0].shape == (6, K)
    assert out["test_cls"][1].shape == (4, K)
    assert out["test_ctrs"][0].shape == (6, K, P, 2)
    assert out["test_ctrs"][1].shape == (4, K, P, 2)

    # correctness check of the fused Pallas kernel against a pure-JAX reference
    # that uses the exact same mixed precision (bf16 matmuls, f32 GN/accum)
    with jax.default_matmul_precision("highest"):
        pr, at, cl = params["pred"], params["att"], params["cls"]

        ref_outs = []
        for k in range(K):
            h = _linear_res(actors, pr["w1"][k], pr["g1"][k], pr["b1"][k],
                            pr["w2"][k], pr["g2"][k], pr["b2"][k])
            ref_outs.append(_bf16_dot(h, pr["wo"][k]) + pr["bo"][k])
        ref_deltas = jnp.concatenate(ref_outs, axis=0)               # (K*N, 2P)

        lane = jnp.arange(2 * P)[None, :]
        xm = (lane % 2 == 0).astype(jnp.float32)
        dx = -jnp.sum(ref_deltas * xm, axis=-1, keepdims=True)
        dy = -jnp.sum(ref_deltas * (1.0 - xm), axis=-1, keepdims=True)

        h = jnp.maximum(dx * at["wd0"][0:1] + dy * at["wd0"][1:2] + at["bd0"], 0.0)
        h = jnp.maximum(_gn1(_bf16_dot(h, at["wd1"]), at["gd1"], at["bd1"]), 0.0)
        agt_b = _bf16_dot(actors, at["wab"])
        agt_b = jnp.concatenate([agt_b] * K, axis=0)
        z = _bf16_dot(h, at["wat"]) + agt_b
        feats = jnp.maximum(_gn1(z, at["ga"], at["ba"]), 0.0)
        hc = _linear_res(feats, cl["w1"], cl["g1"], cl["b1"],
                         cl["w2"], cl["g2"], cl["b2"])
        ref_logits = (jnp.sum(hc * cl["wo_row"], axis=-1, keepdims=True)
                      + cl["bo"]).reshape(K, N).T                    # (N, K)

    np.testing.assert_allclose(np.asarray(aux["deltas_flat"]),
                               np.asarray(ref_deltas), rtol=2e-3, atol=2e-3)
    np.testing.assert_allclose(np.asarray(aux["cls_logits"]),
                               np.asarray(ref_logits), rtol=2e-3, atol=2e-3)

    print("KERNEL_OK")
</pallas_src>

<mosaic_0001>
module attributes {stable_mosaic.version = 11 : i64} {
  func.func @_testnet_kernel(%arg0: memref<10x32xf32, #tpu.memory_space<vmem>>, %arg1: memref<352x32xbf16, #tpu.memory_space<vmem>>, %arg2: memref<3x32x10xbf16, #tpu.memory_space<vmem>>, %arg3: memref<28x32xf32, #tpu.memory_space<vmem>>, %arg4: memref<30x10xf32, #tpu.memory_space<vmem>>, %arg5: memref<30x1xf32, #tpu.memory_space<vmem>>) attributes {dimension_semantics = [], scalar_prefetch = 0 : i64, scratch_operands = 0 : i64, tpu.core_type = #tpu.core_type<tc>} {
    %c0 = arith.constant 0 : index
    %c0_0 = arith.constant 0 : index
    %0 = vector.load %arg0[%c0, %c0_0] : memref<10x32xf32, #tpu.memory_space<vmem>>, vector<10x32xf32>
    %c0_1 = arith.constant 0 : index
    %c0_2 = arith.constant 0 : index
    %1 = vector.load %arg3[%c0_1, %c0_2] : memref<28x32xf32, #tpu.memory_space<vmem>>, vector<28x32xf32>
    %c0_3 = arith.constant 0 : index
    %c0_4 = arith.constant 0 : index
    %2 = vector.load %arg1[%c0_3, %c0_4] : memref<352x32xbf16, #tpu.memory_space<vmem>>, vector<32x32xbf16>
    %3 = vector.extract_strided_slice %1 {offsets = [0, 0], sizes = [1, 32], strides = [1, 1]} : vector<28x32xf32> to vector<1x32xf32>
    %4 = vector.extract_strided_slice %1 {offsets = [1, 0], sizes = [1, 32], strides = [1, 1]} : vector<28x32xf32> to vector<1x32xf32>
    %c32 = arith.constant 32 : index
    %c0_5 = arith.constant 0 : index
    %5 = vector.load %arg1[%c32, %c0_5] : memref<352x32xbf16, #tpu.memory_space<vmem>>, vector<32x32xbf16>
    %6 = vector.extract_strided_slice %1 {offsets = [2, 0], sizes = [1, 32], strides = [1, 1]} : vector<28x32xf32> to vector<1x32xf32>
    %7 = vector.extract_strided_slice %1 {offsets = [3, 0], sizes = [1, 32], strides = [1, 1]} : vector<28x32xf32> to vector<1x32xf32>
    %8 = arith.truncf %0 : vector<10x32xf32> to vector<10x32xbf16>
    %cst = arith.constant dense<0.000000e+00> : vector<10x32xf32>
    %9 = tpu.matmul %8, %2, %cst {dimension_numbers = #tpu.dot_dimension_numbers<[1], [0], [0], [1], [0, 0, 1, 1], [], []>} : vector<10x32xbf16>, vector<32x32xbf16>, vector<10x32xf32> -> vector<10x32xf32>
    %cst_6 = arith.constant dense<0.000000e+00> : vector<10xf32>
    %10 = vector.multi_reduction <add>, %9, %cst_6 [1] : vector<10x32xf32> to vector<10xf32>
    %11 = vector.shape_cast %10 : vector<10xf32> to vector<10x1xf32>
    %cst_7 = arith.constant 3.200000e+01 : f32
    %12 = vector.broadcast %cst_7 : f32 to vector<10x1xf32>
    %13 = arith.divf %11, %12 : vector<10x1xf32>
    %14 = vector.broadcast %13 : vector<10x1xf32> to vector<10x32xf32>
    %15 = arith.subf %9, %14 : vector<10x32xf32>
    %16 = arith.mulf %15, %15 : vector<10x32xf32>
    %cst_8 = arith.constant dense<0.000000e+00> : vector<10xf32>
    %17 = vector.multi_reduction <add>, %16, %cst_8 [1] : vector<10x32xf32> to vector<10xf32>
    %18 = vector.shape_cast %17 : vector<10xf32> to vector<10x1xf32>
    %cst_9 = arith.constant 3.200000e+01 : f32
    %19 = vector.broadcast %cst_9 : f32 to vector<10x1xf32>
    %20 = arith.divf %18, %19 : vector<10x1xf32>
    %21 = vector.broadcast %13 : vector<10x1xf32> to vector<10x32xf32>
    %22 = arith.subf %9, %21 : vector<10x32xf32>
    %cst_10 = arith.constant 9.99999974E-6 : f32
    %23 = vector.broadcast %cst_10 : f32 to vector<10x1xf32>
    %24 = arith.addf %20, %23 : vector<10x1xf32>
    %25 = math.rsqrt %24 : vector<10x1xf32>
    %26 = vector.broadcast %25 : vector<10x1xf32> to vector<10x32xf32>
    %27 = arith.mulf %22, %26 : vector<10x32xf32>
    %28 = vector.broadcast %3 : vector<1x32xf32> to vector<10x32xf32>
    %29 = arith.mulf %27, %28 : vector<10x32xf32>
    %30 = vector.broadcast %4 : vector<1x32xf32> to vector<10x32xf32>
    %31 = arith.addf %29, %30 : vector<10x32xf32>
    %cst_11 = arith.constant 0.000000e+00 : f32
    %32 = vector.broadcast %cst_11 : f32 to vector<10x32xf32>
    %33 = arith.maximumf %31, %32 : vector<10x32xf32>
    %34 = arith.truncf %33 : vector<10x32xf32> to vector<10x32xbf16>
    %cst_12 = arith.constant dense<0.000000e+00> : vector<10x32xf32>
    %35 = tpu.matmul %34, %5, %cst_12 {dimension_numbers = #tpu.dot_dimension_numbers<[1], [0], [0], [1], [0, 0, 1, 1], [], []>} : vector<10x32xbf16>, vector<32x32xbf16>, vector<10x32xf32> -> vector<10x32xf32>
    %cst_13 = arith.constant dense<0.000000e+00> : vector<10xf32>
    %36 = vector.multi_reduction <add>, %35, %cst_13 [1] : vector<10x32xf32> to vector<10xf32>
    %37 = vector.shape_cast %36 : vector<10xf32> to vector<10x1xf32>
    %cst_14 = arith.constant 3.200000e+01 : f32
    %38 = vector.broadcast %cst_14 : f32 to vector<10x1xf32>
    %39 = arith.divf %37, %38 : vector<10x1xf32>
    %40 = vector.broadcast %39 : vector<10x1xf32> to vector<10x32xf32>
    %41 = arith.subf %35, %40 : vector<10x32xf32>
    %42 = arith.mulf %41, %41 : vector<10x32xf32>
    %cst_15 = arith.constant dense<0.000000e+00> : vector<10xf32>
    %43 = vector.multi_reduction <add>, %42, %cst_15 [1] : vector<10x32xf32> to vector<10xf32>
    %44 = vector.shape_cast %43 : vector<10xf32> to vector<10x1xf32>
    %cst_16 = arith.constant 3.200000e+01 : f32
    %45 = vector.broadcast %cst_16 : f32 to vector<10x1xf32>
    %46 = arith.divf %44, %45 : vector<10x1xf32>
    %47 = vector.broadcast %39 : vector<10x1xf32> to vector<10x32xf32>
    %48 = arith.subf %35, %47 : vector<10x32xf32>
    %cst_17 = arith.constant 9.99999974E-6 : f32
    %49 = vector.broadcast %cst_17 : f32 to vector<10x1xf32>
    %50 = arith.addf %46, %49 : vector<10x1xf32>
    %51 = math.rsqrt %50 : vector<10x1xf32>
    %52 = vector.broadcast %51 : vector<10x1xf32> to vector<10x32xf32>
    %53 = arith.mulf %48, %52 : vector<10x32xf32>
    %54 = vector.broadcast %6 : vector<1x32xf32> to vector<10x32xf32>
    %55 = arith.mulf %53, %54 : vector<10x32xf32>
    %56 = vector.broadcast %7 : vector<1x32xf32> to vector<10x32xf32>
    %57 = arith.addf %55, %56 : vector<10x32xf32>
    %58 = arith.addf %57, %0 : vector<10x32xf32>
    %cst_18 = arith.constant 0.000000e+00 : f32
    %59 = vector.broadcast %cst_18 : f32 to vector<10x32xf32>
    %60 = arith.maximumf %58, %59 : vector<10x32xf32>
    %c0_19 = arith.constant 0 : index
    %c0_20 = arith.constant 0 : index
    %c0_21 = arith.constant 0 : index
    %61 = vector.load %arg2[%c0_19, %c0_20, %c0_21] : memref<3x32x10xbf16, #tpu.memory_space<vmem>>, vector<1x32x10xbf16>
    %62 = vector.shape_cast %61 : vector<1x32x10xbf16> to vector<32x10xbf16>
    %63 = arith.truncf %60 : vector<10x32xf32> to vector<10x32xbf16>
    %cst_22 = arith.constant dense<0.000000e+00> : vector<10x10xf32>
    %64 = tpu.matmul %63, %62, %cst_22 {dimension_numbers = #tpu.dot_dimension_numbers<[1], [0], [0], [1], [0, 0, 1, 1], [], []>} : vector<10x32xbf16>, vector<32x10xbf16>, vector<10x10xf32> -> vector<10x10xf32>
    %65 = vector.extract_strided_slice %1 {offsets = [4, 0], sizes = [1, 32], strides = [1, 1]} : vector<28x32xf32> to vector<1x32xf32>
    %66 = vector.extract_strided_slice %65 {offsets = [0, 0], sizes = [1, 10], strides = [1, 1]} : vector<1x32xf32> to vector<1x10xf32>
    %67 = vector.broadcast %66 : vector<1x10xf32> to vector<10x10xf32>
    %68 = arith.addf %64, %67 : vector<10x10xf32>
    %c64 = arith.constant 64 : index
    %c0_23 = arith.constant 0 : index
    %69 = vector.load %arg1[%c64, %c0_23] : memref<352x32xbf16, #tpu.memory_space<vmem>>, vector<32x32xbf16>
    %70 = vector.extract_strided_slice %1 {offsets = [5, 0], sizes = [1, 32], strides = [1, 1]} : vector<28x32xf32> to vector<1x32xf32>
    %71 = vector.extract_strided_slice %1 {offsets = [6, 0], sizes = [1, 32], strides = [1, 1]} : vector<28x32xf32> to vector<1x32xf32>
    %c96 = arith.constant 96 : index
    %c0_24 = arith.constant 0 : index
    %72 = vector.load %arg1[%c96, %c0_24] : memref<352x32xbf16, #tpu.memory_space<vmem>>, vector<32x32xbf16>
    %73 = vector.extract_strided_slice %1 {offsets = [7, 0], sizes = [1, 32], strides = [1, 1]} : vector<28x32xf32> to vector<1x32xf32>
    %74 = vector.extract_strided_slice %1 {offsets = [8, 0], sizes = [1, 32], strides = [1, 1]} : vector<28x32xf32> to vector<1x32xf32>
    %75 = arith.truncf %0 : vector<10x32xf32> to vector<10x32xbf16>
    %cst_25 = arith.constant dense<0.000000e+00> : vector<10x32xf32>
    %76 = tpu.matmul %75, %69, %cst_25 {dimension_numbers = #tpu.dot_dimension_numbers<[1], [0], [0], [1], [0, 0, 1, 1], [], []>} : vector<10x32xbf16>, vector<32x32xbf16>, vector<10x32xf32> -> vector<10x32xf32>
    %cst_26 = arith.constant dense<0.000000e+00> : vector<10xf32>
    %77 = vector.multi_reduction <add>, %76, %cst_26 [1] : vector<10x32xf32> to vector<10xf32>
    %78 = vector.shape_cast %77 : vector<10xf32> to vector<10x1xf32>
    %cst_27 = arith.constant 3.200000e+01 : f32
    %79 = vector.broadcast %cst_27 : f32 to vector<10x1xf32>
    %80 = arith.divf %78, %79 : vector<10x1xf32>
    %81 = vector.broadcast %80 : vector<10x1xf32> to vector<10x32xf32>
    %82 = arith.subf %76, %81 : vector<10x32xf32>
    %83 = arith.mulf %82, %82 : vector<10x32xf32>
    %cst_28 = arith.constant dense<0.000000e+00> : vector<10xf32>
    %84 = vector.multi_reduction <add>, %83, %cst_28 [1] : vector<10x32xf32> to vector<10xf32>
    %85 = vector.shape_cast %84 : vector<10xf32> to vector<10x1xf32>
    %cst_29 = arith.constant 3.200000e+01 : f32
    %86 = vector.broadcast %cst_29 : f32 to vector<10x1xf32>
    %87 = arith.divf %85, %86 : vector<10x1xf32>
    %88 = vector.broadcast %80 : vector<10x1xf32> to vector<10x32xf32>
    %89 = arith.subf %76, %88 : vector<10x32xf32>
    %cst_30 = arith.constant 9.99999974E-6 : f32
    %90 = vector.broadcast %cst_30 : f32 to vector<10x1xf32>
    %91 = arith.addf %87, %90 : vector<10x1xf32>
    %92 = math.rsqrt %91 : vector<10x1xf32>
    %93 = vector.broadcast %92 : vector<10x1xf32> to vector<10x32xf32>
    %94 = arith.mulf %89, %93 : vector<10x32xf32>
    %95 = vector.broadcast %70 : vector<1x32xf32> to vector<10x32xf32>
    %96 = arith.mulf %94, %95 : vector<10x32xf32>
    %97 = vector.broadcast %71 : vector<1x32xf32> to vector<10x32xf32>
    %98 = arith.addf %96, %97 : vector<10x32xf32>
    %cst_31 = arith.constant 0.000000e+00 : f32
    %99 = vector.broadcast %cst_31 : f32 to vector<10x32xf32>
    %100 = arith.maximumf %98, %99 : vector<10x32xf32>
    %101 = arith.truncf %100 : vector<10x32xf32> to vector<10x32xbf16>
    %cst_32 = arith.constant dense<0.000000e+00> : vector<10x32xf32>
    %102 = tpu.matmul %101, %72, %cst_32 {dimension_numbers = #tpu.dot_dimension_numbers<[1], [0], [0], [1], [0, 0, 1, 1], [], []>} : vector<10x32xbf16>, vector<32x32xbf16>, vector<10x32xf32> -> vector<10x32xf32>
    %cst_33 = arith.constant dense<0.000000e+00> : vector<10xf32>
    %103 = vector.multi_reduction <add>, %102, %cst_33 [1] : vector<10x32xf32> to vector<10xf32>
    %104 = vector.shape_cast %103 : vector<10xf32> to vector<10x1xf32>
    %cst_34 = arith.constant 3.200000e+01 : f32
    %105 = vector.broadcast %cst_34 : f32 to vector<10x1xf32>
    %106 = arith.divf %104, %105 : vector<10x1xf32>
    %107 = vector.broadcast %106 : vector<10x1xf32> to vector<10x32xf32>
    %108 = arith.subf %102, %107 : vector<10x32xf32>
    %109 = arith.mulf %108, %108 : vector<10x32xf32>
    %cst_35 = arith.constant dense<0.000000e+00> : vector<10xf32>
    %110 = vector.multi_reduction <add>, %109, %cst_35 [1] : vector<10x32xf32> to vector<10xf32>
    %111 = vector.shape_cast %110 : vector<10xf32> to vector<10x1xf32>
    %cst_36 = arith.constant 3.200000e+01 : f32
    %112 = vector.broadcast %cst_36 : f32 to vector<10x1xf32>
    %113 = arith.divf %111, %112 : vector<10x1xf32>
    %114 = vector.broadcast %106 : vector<10x1xf32> to vector<10x32xf32>
    %115 = arith.subf %102, %114 : vector<10x32xf32>
    %cst_37 = arith.constant 9.99999974E-6 : f32
    %116 = vector.broadcast %cst_37 : f32 to vector<10x1xf32>
    %117 = arith.addf %113, %116 : vector<10x1xf32>
    %118 = math.rsqrt %117 : vector<10x1xf32>
    %119 = vector.broadcast %118 : vector<10x1xf32> to vector<10x32xf32>
    %120 = arith.mulf %115, %119 : vector<10x32xf32>
    %121 = vector.broadcast %73 : vector<1x32xf32> to vector<10x32xf32>
    %122 = arith.mulf %120, %121 : vector<10x32xf32>
    %123 = vector.broadcast %74 : vector<1x32xf32> to vector<10x32xf32>
    %124 = arith.addf %122, %123 : vector<10x32xf32>
    %125 = arith.addf %124, %0 : vector<10x32xf32>
    %cst_38 = arith.constant 0.000000e+00 : f32
    %126 = vector.broadcast %cst_38 : f32 to vector<10x32xf32>
    %127 = arith.maximumf %125, %126 : vector<10x32xf32>
    %c1 = arith.constant 1 : index
    %c0_39 = arith.constant 0 : index
    %c0_40 = arith.constant 0 : index
    %128 = vector.load %arg2[%c1, %c0_39, %c0_40] : memref<3x32x10xbf16, #tpu.memory_space<vmem>>, vector<1x32x10xbf16>
    %129 = vector.shape_cast %128 : vector<1x32x10xbf16> to vector<32x10xbf16>
    %130 = arith.truncf %127 : vector<10x32xf32> to vector<10x32xbf16>
    %cst_41 = arith.constant dense<0.000000e+00> : vector<10x10xf32>
    %131 = tpu.matmul %130, %129, %cst_41 {dimension_numbers = #tpu.dot_dimension_numbers<[1], [0], [0], [1], [0, 0, 1, 1], [], []>} : vector<10x32xbf16>, vector<32x10xbf16>, vector<10x10xf32> -> vector<10x10xf32>
    %132 = vector.extract_strided_slice %1 {offsets = [9, 0], sizes = [1, 32], strides = [1, 1]} : vector<28x32xf32> to vector<1x32xf32>
    %133 = vector.extract_strided_slice %132 {offsets = [0, 0], sizes = [1, 10], strides = [1, 1]} : vector<1x32xf32> to vector<1x10xf32>
    %134 = vector.broadcast %133 : vector<1x10xf32> to vector<10x10xf32>
    %135 = arith.addf %131, %134 : vector<10x10xf32>
    %c128 = arith.constant 128 : index
    %c0_42 = arith.constant 0 : index
    %136 = vector.load %arg1[%c128, %c0_42] : memref<352x32xbf16, #tpu.memory_space<vmem>>, vector<32x32xbf16>
    %137 = vector.extract_strided_slice %1 {offsets = [10, 0], sizes = [1, 32], strides = [1, 1]} : vector<28x32xf32> to vector<1x32xf32>
    %138 = vector.extract_strided_slice %1 {offsets = [11, 0], sizes = [1, 32], strides = [1, 1]} : vector<28x32xf32> to vector<1x32xf32>
    %c160 = arith.constant 160 : index
    %c0_43 = arith.constant 0 : index
    %139 = vector.load %arg1[%c160, %c0_43] : memref<352x32xbf16, #tpu.memory_space<vmem>>, vector<32x32xbf16>
    %140 = vector.extract_strided_slice %1 {offsets = [12, 0], sizes = [1, 32], strides = [1, 1]} : vector<28x32xf32> to vector<1x32xf32>
    %141 = vector.extract_strided_slice %1 {offsets = [13, 0], sizes = [1, 32], strides = [1, 1]} : vector<28x32xf32> to vector<1x32xf32>
    %142 = arith.truncf %0 : vector<10x32xf32> to vector<10x32xbf16>
    %cst_44 = arith.constant dense<0.000000e+00> : vector<10x32xf32>
    %143 = tpu.matmul %142, %136, %cst_44 {dimension_numbers = #tpu.dot_dimension_numbers<[1], [0], [0], [1], [0, 0, 1, 1], [], []>} : vector<10x32xbf16>, vector<32x32xbf16>, vector<10x32xf32> -> vector<10x32xf32>
    %cst_45 = arith.constant dense<0.000000e+00> : vector<10xf32>
    %144 = vector.multi_reduction <add>, %143, %cst_45 [1] : vector<10x32xf32> to vector<10xf32>
    %145 = vector.shape_cast %144 : vector<10xf32> to vector<10x1xf32>
    %cst_46 = arith.constant 3.200000e+01 : f32
    %146 = vector.broadcast %cst_46 : f32 to vector<10x1xf32>
    %147 = arith.divf %145, %146 : vector<10x1xf32>
    %148 = vector.broadcast %147 : vector<10x1xf32> to vector<10x32xf32>
    %149 = arith.subf %143, %148 : vector<10x32xf32>
    %150 = arith.mulf %149, %149 : vector<10x32xf32>
    %cst_47 = arith.constant dense<0.000000e+00> : vector<10xf32>
    %151 = vector.multi_reduction <add>, %150, %cst_47 [1] : vector<10x32xf32> to vector<10xf32>
    %152 = vector.shape_cast %151 : vector<10xf32> to vector<10x1xf32>
    %cst_48 = arith.constant 3.200000e+01 : f32
    %153 = vector.broadcast %cst_48 : f32 to vector<10x1xf32>
    %154 = arith.divf %152, %153 : vector<10x1xf32>
    %155 = vector.broadcast %147 : vector<10x1xf32> to vector<10x32xf32>
    %156 = arith.subf %143, %155 : vector<10x32xf32>
    %cst_49 = arith.constant 9.99999974E-6 : f32
    %157 = vector.broadcast %cst_49 : f32 to vector<10x1xf32>
    %158 = arith.addf %154, %157 : vector<10x1xf32>
    %159 = math.rsqrt %158 : vector<10x1xf32>
    %160 = vector.broadcast %159 : vector<10x1xf32> to vector<10x32xf32>
    %161 = arith.mulf %156, %160 : vector<10x32xf32>
    %162 = vector.broadcast %137 : vector<1x32xf32> to vector<10x32xf32>
    %163 = arith.mulf %161, %162 : vector<10x32xf32>
    %164 = vector.broadcast %138 : vector<1x32xf32> to vector<10x32xf32>
    %165 = arith.addf %163, %164 : vector<10x32xf32>
    %cst_50 = arith.constant 0.000000e+00 : f32
    %166 = vector.broadcast %cst_50 : f32 to vector<10x32xf32>
    %167 = arith.maximumf %165, %166 : vector<10x32xf32>
    %168 = arith.truncf %167 : vector<10x32xf32> to vector<10x32xbf16>
    %cst_51 = arith.constant dense<0.000000e+00> : vector<10x32xf32>
    %169 = tpu.matmul %168, %139, %cst_51 {dimension_numbers = #tpu.dot_dimension_numbers<[1], [0], [0], [1], [0, 0, 1, 1], [], []>} : vector<10x32xbf16>, vector<32x32xbf16>, vector<10x32xf32> -> vector<10x32xf32>
    %cst_52 = arith.constant dense<0.000000e+00> : vector<10xf32>
    %170 = vector.multi_reduction <add>, %169, %cst_52 [1] : vector<10x32xf32> to vector<10xf32>
    %171 = vector.shape_cast %170 : vector<10xf32> to vector<10x1xf32>
    %cst_53 = arith.constant 3.200000e+01 : f32
    %172 = vector.broadcast %cst_53 : f32 to vector<10x1xf32>
    %173 = arith.divf %171, %172 : vector<10x1xf32>
    %174 = vector.broadcast %173 : vector<10x1xf32> to vector<10x32xf32>
    %175 = arith.subf %169, %174 : vector<10x32xf32>
    %176 = arith.mulf %175, %175 : vector<10x32xf32>
    %cst_54 = arith.constant dense<0.000000e+00> : vector<10xf32>
    %177 = vector.multi_reduction <add>, %176, %cst_54 [1] : vector<10x32xf32> to vector<10xf32>
    %178 = vector.shape_cast %177 : vector<10xf32> to vector<10x1xf32>
    %cst_55 = arith.constant 3.200000e+01 : f32
    %179 = vector.broadcast %cst_55 : f32 to vector<10x1xf32>
    %180 = arith.divf %178, %179 : vector<10x1xf32>
    %181 = vector.broadcast %173 : vector<10x1xf32> to vector<10x32xf32>
    %182 = arith.subf %169, %181 : vector<10x32xf32>
    %cst_56 = arith.constant 9.99999974E-6 : f32
    %183 = vector.broadcast %cst_56 : f32 to vector<10x1xf32>
    %184 = arith.addf %180, %183 : vector<10x1xf32>
    %185 = math.rsqrt %184 : vector<10x1xf32>
    %186 = vector.broadcast %185 : vector<10x1xf32> to vector<10x32xf32>
    %187 = arith.mulf %182, %186 : vector<10x32xf32>
    %188 = vector.broadcast %140 : vector<1x32xf32> to vector<10x32xf32>
    %189 = arith.mulf %187, %188 : vector<10x32xf32>
    %190 = vector.broadcast %141 : vector<1x32xf32> to vector<10x32xf32>
    %191 = arith.addf %189, %190 : vector<10x32xf32>
    %192 = arith.addf %191, %0 : vector<10x32xf32>
    %cst_57 = arith.constant 0.000000e+00 : f32
    %193 = vector.broadcast %cst_57 : f32 to vector<10x32xf32>
    %194 = arith.maximumf %192, %193 : vector<10x32xf32>
    %c2 = arith.constant 2 : index
    %c0_58 = arith.constant 0 : index
    %c0_59 = arith.constant 0 : index
    %195 = vector.load %arg2[%c2, %c0_58, %c0_59] : memref<3x32x10xbf16, #tpu.memory_space<vmem>>, vector<1x32x10xbf16>
    %196 = vector.shape_cast %195 : vector<1x32x10xbf16> to vector<32x10xbf16>
    %197 = arith.truncf %194 : vector<10x32xf32> to vector<10x32xbf16>
    %cst_60 = arith.constant dense<0.000000e+00> : vector<10x10xf32>
    %198 = tpu.matmul %197, %196, %cst_60 {dimension_numbers = #tpu.dot_dimension_numbers<[1], [0], [0], [1], [0, 0, 1, 1], [], []>} : vector<10x32xbf16>, vector<32x10xbf16>, vector<10x10xf32> -> vector<10x10xf32>
    %199 = vector.extract_strided_slice %1 {offsets = [14, 0], sizes = [1, 32], strides = [1, 1]} : vector<28x32xf32> to vector<1x32xf32>
    %200 = vector.extract_strided_slice %199 {offsets = [0, 0], sizes = [1, 10], strides = [1, 1]} : vector<1x32xf32> to vector<1x10xf32>
    %201 = vector.broadcast %200 : vector<1x10xf32> to vector<10x10xf32>
    %202 = arith.addf %198, %201 : vector<10x10xf32>
    %203 = tpu.concatenate %68, %135, %202 in 0 : vector<10x10xf32>, vector<10x10xf32>, vector<10x10xf32> -> vector<30x10xf32>
    %c0_61 = arith.constant 0 : index
    %c0_62 = arith.constant 0 : index
    %204 = vector.load %arg4[%c0_61, %c0_62] : memref<30x10xf32, #tpu.memory_space<vmem>>, vector<30x10xf32>
    tpu.vector_store %arg4[%c0_61, %c0_62], %203 {strides = array<i32>} : memref<30x10xf32, #tpu.memory_space<vmem>>, vector<30x10xf32>,
    %205 = tpu.iota {dimensions = array<i32: 1>} : vector<1x10xi32>
    %c2_i32 = arith.constant 2 : i32
    %c0_i32 = arith.constant 0 : i32
    %206 = arith.cmpi eq, %c2_i32, %c0_i32 : i32
    %c1_i32 = arith.constant 1 : i32
    %207 = arith.select %206, %c1_i32, %c2_i32 : i32
    %208 = vector.broadcast %207 : i32 to vector<1x10xi32>
    %209 = arith.remsi %205, %208 : vector<1x10xi32>
    %c0_i32_63 = arith.constant 0 : i32
    %210 = vector.broadcast %c0_i32_63 : i32 to vector<1x10xi32>
    %211 = arith.cmpi ne, %209, %210 : vector<1x10xi32>
    %c0_i32_64 = arith.constant 0 : i32
    %212 = vector.broadcast %c0_i32_64 : i32 to vector<1x10xi32>
    %213 = arith.cmpi slt, %209, %212 : vector<1x10xi32>
    %c0_i32_65 = arith.constant 0 : i32
    %214 = arith.cmpi slt, %207, %c0_i32_65 : i32
    %215 = vector.broadcast %214 : i1 to vector<1x10xi1>
    %216 = vector.broadcast %215 : vector<1x10xi1> to vector<1x10xi1>
    %217 = arith.xori %213, %216 : vector<1x10xi1>
    %218 = arith.andi %217, %211 : vector<1x10xi1>
    %219 = vector.broadcast %207 : i32 to vector<1x10xi32>
    %220 = arith.addi %209, %219 : vector<1x10xi32>
    %221 = arith.select %218, %220, %209 : vector<1x10xi1>, vector<1x10xi32>
    %c0_i32_66 = arith.constant 0 : i32
    %222 = vector.broadcast %c0_i32_66 : i32 to vector<1x10xi32>
    %223 = arith.cmpi eq, %221, %222 : vector<1x10xi32>
    %224 = arith.extui %223 : vector<1x10xi1> to vector<1x10xi32>
    %225 = arith.sitofp %224 : vector<1x10xi32> to vector<1x10xf32>
    %226 = vector.broadcast %225 : vector<1x10xf32> to vector<30x10xf32>
    %227 = arith.mulf %203, %226 : vector<30x10xf32>
    %cst_67 = arith.constant dense<0.000000e+00> : vector<30xf32>
    %228 = vector.multi_reduction <add>, %227, %cst_67 [1] : vector<30x10xf32> to vector<30xf32>
    %229 = vector.shape_cast %228 : vector<30xf32> to vector<30x1xf32>
    %cst_68 = arith.constant 0.000000e+00 : f32
    %230 = vector.broadcast %cst_68 : f32 to vector<30x1xf32>
    %231 = arith.subf %230, %229 : vector<30x1xf32>
    %cst_69 = arith.constant 1.000000e+00 : f32
    %232 = vector.broadcast %cst_69 : f32 to vector<1x10xf32>
    %233 = arith.subf %232, %225 : vector<1x10xf32>
    %234 = vector.broadcast %233 : vector<1x10xf32> to vector<30x10xf32>
    %235 = arith.mulf %203, %234 : vector<30x10xf32>
    %cst_70 = arith.constant dense<0.000000e+00> : vector<30xf32>
    %236 = vector.multi_reduction <add>, %235, %cst_70 [1] : vector<30x10xf32> to vector<30xf32>
    %237 = vector.shape_cast %236 : vector<30xf32> to vector<30x1xf32>
    %cst_71 = arith.constant 0.000000e+00 : f32
    %238 = vector.broadcast %cst_71 : f32 to vector<30x1xf32>
    %239 = arith.subf %238, %237 : vector<30x1xf32>
    %240 = vector.extract_strided_slice %1 {offsets = [15, 0], sizes = [1, 32], strides = [1, 1]} : vector<28x32xf32> to vector<1x32xf32>
    %241 = vector.broadcast %231 : vector<30x1xf32> to vector<30x32xf32>
    %242 = vector.broadcast %240 : vector<1x32xf32> to vector<30x32xf32>
    %243 = arith.mulf %241, %242 : vector<30x32xf32>
    %244 = vector.extract_strided_slice %1 {offsets = [16, 0], sizes = [1, 32], strides = [1, 1]} : vector<28x32xf32> to vector<1x32xf32>
    %245 = vector.broadcast %239 : vector<30x1xf32> to vector<30x32xf32>
    %246 = vector.broadcast %244 : vector<1x32xf32> to vector<30x32xf32>
    %247 = arith.mulf %245, %246 : vector<30x32xf32>
    %248 = arith.addf %243, %247 : vector<30x32xf32>
    %249 = vector.extract_strided_slice %1 {offsets = [17, 0], sizes = [1, 32], strides = [1, 1]} : vector<28x32xf32> to vector<1x32xf32>
    %250 = vector.broadcast %249 : vector<1x32xf32> to vector<30x32xf32>
    %251 = arith.addf %248, %250 : vector<30x32xf32>
    %cst_72 = arith.constant 0.000000e+00 : f32
    %252 = vector.broadcast %cst_72 : f32 to vector<30x32xf32>
    %253 = arith.maximumf %251, %252 : vector<30x32xf32>
    %c192 = arith.constant 192 : index
    %c0_73 = arith.constant 0 : index
    %254 = vector.load %arg1[%c192, %c0_73] : memref<352x32xbf16, #tpu.memory_space<vmem>>, vector<32x32xbf16>
    %255 = arith.truncf %253 : vector<30x32xf32> to vector<30x32xbf16>
    %cst_74 = arith.constant dense<0.000000e+00> : vector<30x32xf32>
    %256 = tpu.matmul %255, %254, %cst_74 {dimension_numbers = #tpu.dot_dimension_numbers<[1], [0], [0], [1], [0, 0, 1, 1], [], []>} : vector<30x32xbf16>, vector<32x32xbf16>, vector<30x32xf32> -> vector<30x32xf32>
    %257 = vector.extract_strided_slice %1 {offsets = [18, 0], sizes = [1, 32], strides = [1, 1]} : vector<28x32xf32> to vector<1x32xf32>
    %258 = vector.extract_strided_slice %1 {offsets = [19, 0], sizes = [1, 32], strides = [1, 1]} : vector<28x32xf32> to vector<1x32xf32>
    %cst_75 = arith.constant dense<0.000000e+00> : vector<30xf32>
    %259 = vector.multi_reduction <add>, %256, %cst_75 [1] : vector<30x32xf32> to vector<30xf32>
    %260 = vector.shape_cast %259 : vector<30xf32> to vector<30x1xf32>
    %cst_76 = arith.constant 3.200000e+01 : f32
    %261 = vector.broadcast %cst_76 : f32 to vector<30x1xf32>
    %262 = arith.divf %260, %261 : vector<30x1xf32>
    %263 = vector.broadcast %262 : vector<30x1xf32> to vector<30x32xf32>
    %264 = arith.subf %256, %263 : vector<30x32xf32>
    %265 = arith.mulf %264, %264 : vector<30x32xf32>
    %cst_77 = arith.constant dense<0.000000e+00> : vector<30xf32>
    %266 = vector.multi_reduction <add>, %265, %cst_77 [1] : vector<30x32xf32> to vector<30xf32>
    %267 = vector.shape_cast %266 : vector<30xf32> to vector<30x1xf32>
    %cst_78 = arith.constant 3.200000e+01 : f32
    %268 = vector.broadcast %cst_78 : f32 to vector<30x1xf32>
    %269 = arith.divf %267, %268 : vector<30x1xf32>
    %270 = vector.broadcast %262 : vector<30x1xf32> to vector<30x32xf32>
    %271 = arith.subf %256, %270 : vector<30x32xf32>
    %cst_79 = arith.constant 9.99999974E-6 : f32
    %272 = vector.broadcast %cst_79 : f32 to vector<30x1xf32>
    %273 = arith.addf %269, %272 : vector<30x1xf32>
    %274 = math.rsqrt %273 : vector<30x1xf32>
    %275 = vector.broadcast %274 : vector<30x1xf32> to vector<30x32xf32>
    %276 = arith.mulf %271, %275 : vector<30x32xf32>
    %277 = vector.broadcast %257 : vector<1x32xf32> to vector<30x32xf32>
    %278 = arith.mulf %276, %277 : vector<30x32xf32>
    %279 = vector.broadcast %258 : vector<1x32xf32> to vector<30x32xf32>
    %280 = arith.addf %278, %279 : vector<30x32xf32>
    %cst_80 = arith.constant 0.000000e+00 : f32
    %281 = vector.broadcast %cst_80 : f32 to vector<30x32xf32>
    %282 = arith.maximumf %280, %281 : vector<30x32xf32>
    %c256 = arith.constant 256 : index
    %c0_81 = arith.constant 0 : index
    %283 = vector.load %arg1[%c256, %c0_81] : memref<352x32xbf16, #tpu.memory_space<vmem>>, vector<32x32xbf16>
    %284 = arith.truncf %0 : vector<10x32xf32> to vector<10x32xbf16>
    %cst_82 = arith.constant dense<0.000000e+00> : vector<10x32xf32>
    %285 = tpu.matmul %284, %283, %cst_82 {dimension_numbers = #tpu.dot_dimension_numbers<[1], [0], [0], [1], [0, 0, 1, 1], [], []>} : vector<10x32xbf16>, vector<32x32xbf16>, vector<10x32xf32> -> vector<10x32xf32>
    %286 = tpu.concatenate %285, %285, %285 in 0 : vector<10x32xf32>, vector<10x32xf32>, vector<10x32xf32> -> vector<30x32xf32>
    %c224 = arith.constant 224 : index
    %c0_83 = arith.constant 0 : index
    %287 = vector.load %arg1[%c224, %c0_83] : memref<352x32xbf16, #tpu.memory_space<vmem>>, vector<32x32xbf16>
    %288 = arith.truncf %282 : vector<30x32xf32> to vector<30x32xbf16>
    %cst_84 = arith.constant dense<0.000000e+00> : vector<30x32xf32>
    %289 = tpu.matmul %288, %287, %cst_84 {dimension_numbers = #tpu.dot_dimension_numbers<[1], [0], [0], [1], [0, 0, 1, 1], [], []>} : vector<30x32xbf16>, vector<32x32xbf16>, vector<30x32xf32> -> vector<30x32xf32>
    %290 = arith.addf %289, %286 : vector<30x32xf32>
    %291 = vector.extract_strided_slice %1 {offsets = [20, 0], sizes = [1, 32], strides = [1, 1]} : vector<28x32xf32> to vector<1x32xf32>
    %292 = vector.extract_strided_slice %1 {offsets = [21, 0], sizes = [1, 32], strides = [1, 1]} : vector<28x32xf32> to vector<1x32xf32>
    %cst_85 = arith.constant dense<0.000000e+00> : vector<30xf32>
    %293 = vector.multi_reduction <add>, %290, %cst_85 [1] : vector<30x32xf32> to vector<30xf32>
    %294 = vector.shape_cast %293 : vector<30xf32> to vector<30x1xf32>
    %cst_86 = arith.constant 3.200000e+01 : f32
    %295 = vector.broadcast %cst_86 : f32 to vector<30x1xf32>
    %296 = arith.divf %294, %295 : vector<30x1xf32>
    %297 = vector.broadcast %296 : vector<30x1xf32> to vector<30x32xf32>
    %298 = arith.subf %290, %297 : vector<30x32xf32>
    %299 = arith.mulf %298, %298 : vector<30x32xf32>
    %cst_87 = arith.constant dense<0.000000e+00> : vector<30xf32>
    %300 = vector.multi_reduction <add>, %299, %cst_87 [1] : vector<30x32xf32> to vector<30xf32>
    %301 = vector.shape_cast %300 : vector<30xf32> to vector<30x1xf32>
    %cst_88 = arith.constant 3.200000e+01 : f32
    %302 = vector.broadcast %cst_88 : f32 to vector<30x1xf32>
    %303 = arith.divf %301, %302 : vector<30x1xf32>
    %304 = vector.broadcast %296 : vector<30x1xf32> to vector<30x32xf32>
    %305 = arith.subf %290, %304 : vector<30x32xf32>
    %cst_89 = arith.constant 9.99999974E-6 : f32
    %306 = vector.broadcast %cst_89 : f32 to vector<30x1xf32>
    %307 = arith.addf %303, %306 : vector<30x1xf32>
    %308 = math.rsqrt %307 : vector<30x1xf32>
    %309 = vector.broadcast %308 : vector<30x1xf32> to vector<30x32xf32>
    %310 = arith.mulf %305, %309 : vector<30x32xf32>
    %311 = vector.broadcast %291 : vector<1x32xf32> to vector<30x32xf32>
    %312 = arith.mulf %310, %311 : vector<30x32xf32>
    %313 = vector.broadcast %292 : vector<1x32xf32> to vector<30x32xf32>
    %314 = arith.addf %312, %313 : vector<30x32xf32>
    %cst_90 = arith.constant 0.000000e+00 : f32
    %315 = vector.broadcast %cst_90 : f32 to vector<30x32xf32>
    %316 = arith.maximumf %314, %315 : vector<30x32xf32>
    %c288 = arith.constant 288 : index
    %c0_91 = arith.constant 0 : index
    %317 = vector.load %arg1[%c288, %c0_91] : memref<352x32xbf16, #tpu.memory_space<vmem>>, vector<32x32xbf16>
    %318 = vector.extract_strided_slice %1 {offsets = [22, 0], sizes = [1, 32], strides = [1, 1]} : vector<28x32xf32> to vector<1x32xf32>
    %319 = vector.extract_strided_slice %1 {offsets = [23, 0], sizes = [1, 32], strides = [1, 1]} : vector<28x32xf32> to vector<1x32xf32>
    %c320 = arith.constant 320 : index
    %c0_92 = arith.constant 0 : index
    %320 = vector.load %arg1[%c320, %c0_92] : memref<352x32xbf16, #tpu.memory_space<vmem>>, vector<32x32xbf16>
    %321 = vector.extract_strided_slice %1 {offsets = [24, 0], sizes = [1, 32], strides = [1, 1]} : vector<28x32xf32> to vector<1x32xf32>
    %322 = vector.extract_strided_slice %1 {offsets = [25, 0], sizes = [1, 32], strides = [1, 1]} : vector<28x32xf32> to vector<1x32xf32>
    %323 = arith.truncf %316 : vector<30x32xf32> to vector<30x32xbf16>
    %cst_93 = arith.constant dense<0.000000e+00> : vector<30x32xf32>
    %324 = tpu.matmul %323, %317, %cst_93 {dimension_numbers = #tpu.dot_dimension_numbers<[1], [0], [0], [1], [0, 0, 1, 1], [], []>} : vector<30x32xbf16>, vector<32x32xbf16>, vector<30x32xf32> -> vector<30x32xf32>
    %cst_94 = arith.constant dense<0.000000e+00> : vector<30xf32>
    %325 = vector.multi_reduction <add>, %324, %cst_94 [1] : vector<30x32xf32> to vector<30xf32>
    %326 = vector.shape_cast %325 : vector<30xf32> to vector<30x1xf32>
    %cst_95 = arith.constant 3.200000e+01 : f32
    %327 = vector.broadcast %cst_95 : f32 to vector<30x1xf32>
    %328 = arith.divf %326, %327 : vector<30x1xf32>
    %329 = vector.broadcast %328 : vector<30x1xf32> to vector<30x32xf32>
    %330 = arith.subf %324, %329 : vector<30x32xf32>
    %331 = arith.mulf %330, %330 : vector<30x32xf32>
    %cst_96 = arith.constant dense<0.000000e+00> : vector<30xf32>
    %332 = vector.multi_reduction <add>, %331, %cst_96 [1] : vector<30x32xf32> to vector<30xf32>
    %333 = vector.shape_cast %332 : vector<30xf32> to vector<30x1xf32>
    %cst_97 = arith.constant 3.200000e+01 : f32
    %334 = vector.broadcast %cst_97 : f32 to vector<30x1xf32>
    %335 = arith.divf %333, %334 : vector<30x1xf32>
    %336 = vector.broadcast %328 : vector<30x1xf32> to vector<30x32xf32>
    %337 = arith.subf %324, %336 : vector<30x32xf32>
    %cst_98 = arith.constant 9.99999974E-6 : f32
    %338 = vector.broadcast %cst_98 : f32 to vector<30x1xf32>
    %339 = arith.addf %335, %338 : vector<30x1xf32>
    %340 = math.rsqrt %339 : vector<30x1xf32>
    %341 = vector.broadcast %340 : vector<30x1xf32> to vector<30x32xf32>
    %342 = arith.mulf %337, %341 : vector<30x32xf32>
    %343 = vector.broadcast %318 : vector<1x32xf32> to vector<30x32xf32>
    %344 = arith.mulf %342, %343 : vector<30x32xf32>
    %345 = vector.broadcast %319 : vector<1x32xf32> to vector<30x32xf32>
    %346 = arith.addf %344, %345 : vector<30x32xf32>
    %cst_99 = arith.constant 0.000000e+00 : f32
    %347 = vector.broadcast %cst_99 : f32 to vector<30x32xf32>
    %348 = arith.maximumf %346, %347 : vector<30x32xf32>
    %349 = arith.truncf %348 : vector<30x32xf32> to vector<30x32xbf16>
    %cst_100 = arith.constant dense<0.000000e+00> : vector<30x32xf32>
    %350 = tpu.matmul %349, %320, %cst_100 {dimension_numbers = #tpu.dot_dimension_numbers<[1], [0], [0], [1], [0, 0, 1, 1], [], []>} : vector<30x32xbf16>, vector<32x32xbf16>, vector<30x32xf32> -> vector<30x32xf32>
    %cst_101 = arith.constant dense<0.000000e+00> : vector<30xf32>
    %351 = vector.multi_reduction <add>, %350, %cst_101 [1] : vector<30x32xf32> to vector<30xf32>
    %352 = vector.shape_cast %351 : vector<30xf32> to vector<30x1xf32>
    %cst_102 = arith.constant 3.200000e+01 : f32
    %353 = vector.broadcast %cst_102 : f32 to vector<30x1xf32>
    %354 = arith.divf %352, %353 : vector<30x1xf32>
    %355 = vector.broadcast %354 : vector<30x1xf32> to vector<30x32xf32>
    %356 = arith.subf %350, %355 : vector<30x32xf32>
    %357 = arith.mulf %356, %356 : vector<30x32xf32>
    %cst_103 = arith.constant dense<0.000000e+00> : vector<30xf32>
    %358 = vector.multi_reduction <add>, %357, %cst_103 [1] : vector<30x32xf32> to vector<30xf32>
    %359 = vector.shape_cast %358 : vector<30xf32> to vector<30x1xf32>
    %cst_104 = arith.constant 3.200000e+01 : f32
    %360 = vector.broadcast %cst_104 : f32 to vector<30x1xf32>
    %361 = arith.divf %359, %360 : vector<30x1xf32>
    %362 = vector.broadcast %354 : vector<30x1xf32> to vector<30x32xf32>
    %363 = arith.subf %350, %362 : vector<30x32xf32>
    %cst_105 = arith.constant 9.99999974E-6 : f32
    %364 = vector.broadcast %cst_105 : f32 to vector<30x1xf32>
    %365 = arith.addf %361, %364 : vector<30x1xf32>
    %366 = math.rsqrt %365 : vector<30x1xf32>
    %367 = vector.broadcast %366 : vector<30x1xf32> to vector<30x32xf32>
    %368 = arith.mulf %363, %367 : vector<30x32xf32>
    %369 = vector.broadcast %321 : vector<1x32xf32> to vector<30x32xf32>
    %370 = arith.mulf %368, %369 : vector<30x32xf32>
    %371 = vector.broadcast %322 : vector<1x32xf32> to vector<30x32xf32>
    %372 = arith.addf %370, %371 : vector<30x32xf32>
    %373 = arith.addf %372, %316 : vector<30x32xf32>
    %cst_106 = arith.constant 0.000000e+00 : f32
    %374 = vector.broadcast %cst_106 : f32 to vector<30x32xf32>
    %375 = arith.maximumf %373, %374 : vector<30x32xf32>
    %376 = vector.extract_strided_slice %1 {offsets = [26, 0], sizes = [1, 32], strides = [1, 1]} : vector<28x32xf32> to vector<1x32xf32>
    %377 = vector.broadcast %376 : vector<1x32xf32> to vector<30x32xf32>
    %378 = arith.mulf %375, %377 : vector<30x32xf32>
    %cst_107 = arith.constant dense<0.000000e+00> : vector<30xf32>
    %379 = vector.multi_reduction <add>, %378, %cst_107 [1] : vector<30x32xf32> to vector<30xf32>
    %380 = vector.shape_cast %379 : vector<30xf32> to vector<30x1xf32>
    %381 = vector.extract_strided_slice %1 {offsets = [27, 0], sizes = [1, 1], strides = [1, 1]} : vector<28x32xf32> to vector<1x1xf32>
    %382 = vector.broadcast %381 : vector<1x1xf32> to vector<30x1xf32>
    %383 = arith.addf %380, %382 : vector<30x1xf32>
    %c0_108 = arith.constant 0 : index
    %c0_109 = arith.constant 0 : index
    %384 = vector.load %arg5[%c0_108, %c0_109] : memref<30x1xf32, #tpu.memory_space<vmem>>, vector<30x1xf32>
    tpu.vector_store %arg5[%c0_108, %c0_109], %383 {strides = array<i32>} : memref<30x1xf32, #tpu.memory_space<vmem>>, vector<30x1xf32>,
    return
  }
}

</mosaic_0001>

<llo_original>
// kernel: tpu_custom_call.1
$region0: #{tpu_custom_call.1}
  #allocation0 [shape = 'u32[]', space=smem, size = 0x4, offset = 0x4, fixed_abs, tag = 'smem constant byte address 0x4 - core index']
  #allocation1 [shape = 'u32[144,128]{1,0:T(1,128)}', space=vmem, size = 0x12000, scoped, tag = 'internal scratch']
  %s0 = inlined_call_operand.vmem [shape: f32[10,32], index: 0, kind: input, shape index: {}]
  %s1 = inlined_call_operand.vmem [shape: bf16[352,32], index: 1, kind: input, shape index: {}]
  %s2 = inlined_call_operand.vmem [shape: bf16[3,32,10], index: 2, kind: input, shape index: {}]
  %s3 = inlined_call_operand.vmem [shape: f32[28,32], index: 3, kind: input, shape index: {}]
  %s4 = inlined_call_operand.vmem [shape: f32[30,10], index: 4, kind: output, shape index: {0}]
  %s5 = inlined_call_operand.vmem [shape: f32[30,1], index: 5, kind: output, shape index: {1}]
  %6 = xla_tuple %s4, %s5
  %s7 = sld [smem:[#allocation0]]
  $region34: #{tpu_custom_call.1} parent=0
    _
  %s9 = ssub.s32 1, %s7
  %s10 = scalar_select 0, %s9, %s7
  // Predicated region
  $region2: #{tpu_custom_call.1} parent=0 // pred_check
    _
  $region3: #{tpu_custom_call.1} parent=0 // pred_check_branch
    %12 = sbr.rel (0) target = $region5
  $region4: #{tpu_custom_call.1} parent=0 // pred_region
    _
  $region5: #{tpu_custom_call.1} parent=0 // pred_fallthru
    _
  // Predicated region
  $region6: #{tpu_custom_call.1} parent=0 // pred_check
    _
  $region7: #{tpu_custom_call.1} parent=0 // pred_check_branch
    %14 = sbr.rel (0) target = $region9
  $region8: #{tpu_custom_call.1} parent=0 // pred_region
    _
  $region9: #{tpu_custom_call.1} parent=0 // pred_fallthru
    _
  // Predicated region
  $region10: #{tpu_custom_call.1} parent=0 // pred_check
    _
  $region11: #{tpu_custom_call.1} parent=0 // pred_check_branch
    %16 = sbr.rel (0) target = $region13
  $region12: #{tpu_custom_call.1} parent=0 // pred_region
    _
  $region13: #{tpu_custom_call.1} parent=0 // pred_fallthru
    _
  // Predicated region
  $region14: #{tpu_custom_call.1} parent=0 // pred_check
    _
  $region15: #{tpu_custom_call.1} parent=0 // pred_check_branch
    %18 = sbr.rel (0) target = $region17
  $region16: #{tpu_custom_call.1} parent=0 // pred_region
    _
  $region17: #{tpu_custom_call.1} parent=0 // pred_fallthru
    _
  %v20 = vld [vmem:[%s0] sm:$0xff]
  %v21 = vld [vmem:[%s0 + $0x8] sm:$0x3]
  %v22 = vld [vmem:[%s3] sm:$0xff]
  %v23 = vld [vmem:[%s3 + $0x8] sm:$0xff]
  %v24 = vld [vmem:[%s3 + $0x10] sm:$0xff]
  %v25 = vld [vmem:[%s3 + $0x18] sm:$0xf]
  %v26 = vld [vmem:[%s1] sm:$0xf]
  %v27 = vld [vmem:[%s1 + $0x4] sm:$0xf]
  %v28 = vld [vmem:[%s1 + $0x8] sm:$0xf]
  %v29 = vld [vmem:[%s1 + $0xc] sm:$0xf]
  %v30 = vld [vmem:[%s1 + $0x10] sm:$0xf]
  %v31 = vld [vmem:[%s1 + $0x14] sm:$0xf]
  %v32 = vld [vmem:[%s1 + $0x18] sm:$0xf]
  %v33 = vld [vmem:[%s1 + $0x1c] sm:$0xf]
  %v34 = vpack.c.bf16 %v21, %v20
  %v39 = vunpack.c.l.b16 %v26
  %v40 = vunpack.c.l.b16 %v27
  %v41 = vunpack.c.l.b16 %v28
  %v42 = vunpack.c.l.b16 %v29
  %v43 = vpack.c.b16 %v40, %v39
  %v44 = vpack.c.b16 %v42, %v41
  %vm47 = vcmask 261120
  %v49 = vsel %vm47, %v34, 0
  %51 = vmatprep.subr.bf16.mxu0 0
  %52 = vmatpush1.bf16.msra.mxu0 %v43
  %53 = vmatprep.subr.bf16.mxu0 0
  %54 = vmatpush1.bf16.msra.mxu0 %v44
  %55 = vmatprep.subr.bf16.mxu0 0
  %56 = vmatpush1.bf16.msra.mxu0 0
  %57 = vmatprep.subr.bf16.mxu0 0
  %58 = vmatpush1.bf16.msra.mxu0 0
  %59 = vmatprep.subr.bf16.mxu0 0
  %60 = vmatpush1.bf16.msra.mxu0 0
  %61 = vmatprep.subr.bf16.mxu0 0
  %62 = vmatpush1.bf16.msra.mxu0 0
  %63 = vmatprep.subr.bf16.mxu0 0
  %64 = vmatpush1.bf16.msra.mxu0 0
  %65 = vmatprep.subr.bf16.mxu0 0
  %66 = vmatpush1.bf16.msra.mxu0 0
  %67 = vmatprep.subr.bf16.mxu0 0
  %68 = vmatpush1.bf16.msra.mxu0 0
  %69 = vmatprep.subr.bf16.mxu0 0
  %70 = vmatpush1.bf16.msra.mxu0 0
  %71 = vmatprep.subr.bf16.mxu0 0
  %72 = vmatpush1.bf16.msra.mxu0 0
  %73 = vmatprep.subr.bf16.mxu0 0
  %74 = vmatpush1.bf16.msra.mxu0 0
  %75 = vmatprep.subr.bf16.mxu0 0
  %76 = vmatpush1.bf16.msra.mxu0 0
  %77 = vmatprep.subr.bf16.mxu0 0
  %78 = vmatpush1.bf16.msra.mxu0 0
  %79 = vmatprep.subr.bf16.mxu0 0
  %80 = vmatpush1.bf16.msra.mxu0 0
  %81 = vmatprep.subr.bf16.mxu0 0
  %82 = vmatpush1.bf16.msra.mxu0 0
  %83 = vmatprep.mubr.bf16.mxu0 0
  %84 = vmatmul.mubr.bf16.gmra.mrb[0].mxu0 %v49
  %v85 = vpop.f32.mrb[0].mxu0
  %v86 = vadd.f32 0.0, %v85
  %v87 = vpop.f32.mrb[0].mxu0
  %v88 = vpop.f32.mrb[0].mxu0
  %v89 = vadd.f32 0.0, %v88
  %v90 = vpop.f32.mrb[0].mxu0
  %91 = vdwg.mxu0
  %v92 = vsel %vm47, %v86, 0.0
  %93 = vadd.xlane.f32.xlu0 %v92
  %v94 = vpop.xlane.xlu0 %93
  %vm95 = vcmask 254976
  %v96 = vsel %vm95, %v89, 0.0
  %97 = vadd.xlane.f32.xlu0 %v96
  %v98 = vpop.xlane.xlu0 %97
  %v99 = vrcp.pop 32.0
  %v100 = vmul.f32 %v94, %v99
  %v101 = vmul.f32 %v98, %v99
  %v102 = vsub.f32 %v86, %v100
  %v103 = vsub.f32 %v89, %v101
  %v104 = vmul.f32 %v102, %v102
  %v105 = vmul.f32 %v103, %v103
  %v106 = vsel %vm47, %v104, 0.0
  %107 = vadd.xlane.f32.xlu0 %v106
  %v108 = vpop.xlane.xlu0 %107
  %v109 = vsel %vm95, %v105, 0.0
  %110 = vadd.xlane.f32.xlu0 %v109
  %v111 = vpop.xlane.xlu0 %110
  %v112 = vmul.f32 %v108, %v99
  %v113 = vmul.f32 %v111, %v99
  %v114 = vadd.f32 %v112, 1e-05
  %v115 = vadd.f32 %v113, 1e-05
  %v116 = vrsqrt.pop %v114
  %v117 = vrsqrt.pop %v115
  %v118 = vmul.f32 %v102, %v116
  %v119 = vmul.f32 %v103, %v117
  %v120 = vlaneseq
  %v121 = vshrl.u32 %v120, 7
  %v122 = vsub.s32 0, %v121
  %v123 = vrot.slane %v22, %v122
  %v124 = vmul.f32 %v118, %v123
  %v125 = vmul.f32 %v119, %v123
  %v126 = vlaneseq
  %v127 = vshrl.u32 %v126, 7
  %v128 = vsub.s32 1, %v127
  %v129 = vrot.slane %v22, %v128
  %v130 = vadd.f32 %v124, %v129
  %v131 = vadd.f32 %v125, %v129
  %v132 = vmax.f32 %v130, 0.0
  %v133 = vmax.f32 %v131, 0.0
  %v134 = vpack.c.bf16 %v133, %v132
  %v139 = vunpack.c.l.b16 %v30
  %v140 = vunpack.c.l.b16 %v31
  %v141 = vunpack.c.l.b16 %v32
  %v142 = vunpack.c.l.b16 %v33
  %v143 = vpack.c.b16 %v140, %v139
  %v144 = vpack.c.b16 %v142, %v141
  %v148 = vsel %vm47, %v134, 0
  %150 = vmatprep.subr.bf16.mxu0 0
  %151 = vmatpush1.bf16.msra.mxu0 %v143
  %152 = vmatprep.subr.bf16.mxu0 0
  %153 = vmatpush1.bf16.msra.mxu0 %v144
  %154 = vmatprep.subr.bf16.mxu0 0
  %155 = vmatpush1.bf16.msra.mxu0 0
  %156 = vmatprep.subr.bf16.mxu0 0
  %157 = vmatpush1.bf16.msra.mxu0 0
  %158 = vmatprep.subr.bf16.mxu0 0
  %159 = vmatpush1.bf16.msra.mxu0 0
  %160 = vmatprep.subr.bf16.mxu0 0
  %161 = vmatpush1.bf16.msra.mxu0 0
  %162 = vmatprep.subr.bf16.mxu0 0
  %163 = vmatpush1.bf16.msra.mxu0 0
  %164 = vmatprep.subr.bf16.mxu0 0
  %165 = vmatpush1.bf16.msra.mxu0 0
  %166 = vmatprep.subr.bf16.mxu0 0
  %167 = vmatpush1.bf16.msra.mxu0 0
  %168 = vmatprep.subr.bf16.mxu0 0
  %169 = vmatpush1.bf16.msra.mxu0 0
  %170 = vmatprep.subr.bf16.mxu0 0
  %171 = vmatpush1.bf16.msra.mxu0 0
  %172 = vmatprep.subr.bf16.mxu0 0
  %173 = vmatpush1.bf16.msra.mxu0 0
  %174 = vmatprep.subr.bf16.mxu0 0
  %175 = vmatpush1.bf16.msra.mxu0 0
  %176 = vmatprep.subr.bf16.mxu0 0
  %177 = vmatpush1.bf16.msra.mxu0 0
  %178 = vmatprep.subr.bf16.mxu0 0
  %179 = vmatpush1.bf16.msra.mxu0 0
  %180 = vmatprep.subr.bf16.mxu0 0
  %181 = vmatpush1.bf16.msra.mxu0 0
  %182 = vmatprep.mubr.bf16.mxu0 0
  %183 = vmatmul.mubr.bf16.gmra.mrb[0].mxu0 %v148
  %v184 = vpop.f32.mrb[0].mxu0
  %v185 = vadd.f32 0.0, %v184
  %v186 = vpop.f32.mrb[0].mxu0
  %v187 = vpop.f32.mrb[0].mxu0
  %v188 = vadd.f32 0.0, %v187
  %v189 = vpop.f32.mrb[0].mxu0
  %190 = vdwg.mxu0
  %v191 = vsel %vm47, %v185, 0.0
  %192 = vadd.xlane.f32.xlu0 %v191
  %v193 = vpop.xlane.xlu0 %192
  %v194 = vsel %vm95, %v188, 0.0
  %195 = vadd.xlane.f32.xlu0 %v194
  %v196 = vpop.xlane.xlu0 %195
  %v197 = vmul.f32 %v193, %v99
  %v198 = vmul.f32 %v196, %v99
  %v199 = vsub.f32 %v185, %v197
  %v200 = vsub.f32 %v188, %v198
  %v201 = vmul.f32 %v199, %v199
  %v202 = vmul.f32 %v200, %v200
  %v203 = vsel %vm47, %v201, 0.0
  %204 = vadd.xlane.f32.xlu0 %v203
  %v205 = vpop.xlane.xlu0 %204
  %v206 = vsel %vm95, %v202, 0.0
  %207 = vadd.xlane.f32.xlu0 %v206
  %v208 = vpop.xlane.xlu0 %207
  %v209 = vmul.f32 %v205, %v99
  %v210 = vmul.f32 %v208, %v99
  %v211 = vadd.f32 %v209, 1e-05
  %v212 = vadd.f32 %v210, 1e-05
  %v213 = vrsqrt.pop %v211
  %v214 = vrsqrt.pop %v212
  %v215 = vmul.f32 %v199, %v213
  %v216 = vmul.f32 %v200, %v214
  %v217 = vlaneseq
  %v218 = vshrl.u32 %v217, 7
  %v219 = vsub.s32 2, %v218
  %v220 = vrot.slane %v22, %v219
  %v221 = vmul.f32 %v215, %v220
  %v222 = vmul.f32 %v216, %v220
  %v223 = vlaneseq
  %v224 = vshrl.u32 %v223, 7
  %v225 = vsub.s32 3, %v224
  %v226 = vrot.slane %v22, %v225
  %v227 = vadd.f32 %v221, %v226
  %v228 = vadd.f32 %v222, %v226
  %v229 = vadd.f32 %v227, %v20
  %v230 = vadd.f32 %v228, %v21
  %v231 = vmax.f32 %v229, 0.0
  %v232 = vmax.f32 %v230, 0.0
  %v233 = vld [vmem:[%s2] sm:$0xf]
  %v234 = vld [vmem:[%s2 + $0x4] sm:$0xf]
  %v235 = vld [vmem:[%s2 + $0x8] sm:$0xf]
  %v236 = vld [vmem:[%s2 + $0xc] sm:$0xf]
  %v237 = vpack.c.bf16 %v232, %v231
  %v238 = vlaneseq
  %v239 = vshrl.u32 %v238, 7
  %v240 = vsub.s32 4, %v239
  %v241 = vrot.slane %v22, %v240
  %v246 = vunpack.c.l.b16 %v233
  %v247 = vunpack.c.l.b16 %v234
  %v248 = vunpack.c.l.b16 %v235
  %v249 = vunpack.c.l.b16 %v236
  %v250 = vpack.c.b16 %v247, %v246
  %v251 = vpack.c.b16 %v249, %v248
  %v255 = vsel %vm47, %v237, 0
  %257 = vmatprep.subr.bf16.mxu0 0
  %258 = vmatpush1.bf16.msra.mxu0 %v250
  %259 = vmatprep.subr.bf16.mxu0 0
  %260 = vmatpush1.bf16.msra.mxu0 %v251
  %261 = vmatprep.subr.bf16.mxu0 0
  %262 = vmatpush1.bf16.msra.mxu0 0
  %263 = vmatprep.subr.bf16.mxu0 0
  %264 = vmatpush1.bf16.msra.mxu0 0
  %265 = vmatprep.subr.bf16.mxu0 0
  %266 = vmatpush1.bf16.msra.mxu0 0
  %267 = vmatprep.subr.bf16.mxu0 0
  %268 = vmatpush1.bf16.msra.mxu0 0
  %269 = vmatprep.subr.bf16.mxu0 0
  %270 = vmatpush1.bf16.msra.mxu0 0
  %271 = vmatprep.subr.bf16.mxu0 0
  %272 = vmatpush1.bf16.msra.mxu0 0
  %273 = vmatprep.subr.bf16.mxu0 0
  %274 = vmatpush1.bf16.msra.mxu0 0
  %275 = vmatprep.subr.bf16.mxu0 0
  %276 = vmatpush1.bf16.msra.mxu0 0
  %277 = vmatprep.subr.bf16.mxu0 0
  %278 = vmatpush1.bf16.msra.mxu0 0
  %279 = vmatprep.subr.bf16.mxu0 0
  %280 = vmatpush1.bf16.msra.mxu0 0
  %281 = vmatprep.subr.bf16.mxu0 0
  %282 = vmatpush1.bf16.msra.mxu0 0
  %283 = vmatprep.subr.bf16.mxu0 0
  %284 = vmatpush1.bf16.msra.mxu0 0
  %285 = vmatprep.subr.bf16.mxu0 0
  %286 = vmatpush1.bf16.msra.mxu0 0
  %287 = vmatprep.subr.bf16.mxu0 0
  %288 = vmatpush1.bf16.msra.mxu0 0
  %289 = vmatprep.mubr.bf16.mxu0 0
  %290 = vmatmul.mubr.bf16.gmra.mrb[0].mxu0 %v255
  %v291 = vpop.f32.mrb[0].mxu0
  %v292 = vadd.f32 %v241, %v291
  %v293 = vpop.f32.mrb[0].mxu0
  %v294 = vpop.f32.mrb[0].mxu0
  %v295 = vadd.f32 %v241, %v294
  %v296 = vpop.f32.mrb[0].mxu0
  %297 = vdwg.mxu0
  %v298 = vld [vmem:[%s1 + $0x20] sm:$0xf]
  %v299 = vld [vmem:[%s1 + $0x24] sm:$0xf]
  %v300 = vld [vmem:[%s1 + $0x28] sm:$0xf]
  %v301 = vld [vmem:[%s1 + $0x2c] sm:$0xf]
  %v302 = vld [vmem:[%s1 + $0x30] sm:$0xf]
  %v303 = vld [vmem:[%s1 + $0x34] sm:$0xf]
  %v304 = vld [vmem:[%s1 + $0x38] sm:$0xf]
  %v305 = vld [vmem:[%s1 + $0x3c] sm:$0xf]
  %v310 = vunpack.c.l.b16 %v298
  %v311 = vunpack.c.l.b16 %v299
  %v312 = vunpack.c.l.b16 %v300
  %v313 = vunpack.c.l.b16 %v301
  %v314 = vpack.c.b16 %v311, %v310
  %v315 = vpack.c.b16 %v313, %v312
  %318 = vmatprep.subr.bf16.mxu0 0
  %319 = vmatpush1.bf16.msra.mxu0 %v314
  %320 = vmatprep.subr.bf16.mxu0 0
  %321 = vmatpush1.bf16.msra.mxu0 %v315
  %322 = vmatprep.subr.bf16.mxu0 0
  %323 = vmatpush1.bf16.msra.mxu0 0
  %324 = vmatprep.subr.bf16.mxu0 0
  %325 = vmatpush1.bf16.msra.mxu0 0
  %326 = vmatprep.subr.bf16.mxu0 0
  %327 = vmatpush1.bf16.msra.mxu0 0
  %328 = vmatprep.subr.bf16.mxu0 0
  %329 = vmatpush1.bf16.msra.mxu0 0
  %330 = vmatprep.subr.bf16.mxu0 0
  %331 = vmatpush1.bf16.msra.mxu0 0
  %332 = vmatprep.subr.bf16.mxu0 0
  %333 = vmatpush1.bf16.msra.mxu0 0
  %334 = vmatprep.subr.bf16.mxu0 0
  %335 = vmatpush1.bf16.msra.mxu0 0
  %336 = vmatprep.subr.bf16.mxu0 0
  %337 = vmatpush1.bf16.msra.mxu0 0
  %338 = vmatprep.subr.bf16.mxu0 0
  %339 = vmatpush1.bf16.msra.mxu0 0
  %340 = vmatprep.subr.bf16.mxu0 0
  %341 = vmatpush1.bf16.msra.mxu0 0
  %342 = vmatprep.subr.bf16.mxu0 0
  %343 = vmatpush1.bf16.msra.mxu0 0
  %344 = vmatprep.subr.bf16.mxu0 0
  %345 = vmatpush1.bf16.msra.mxu0 0
  %346 = vmatprep.subr.bf16.mxu0 0
  %347 = vmatpush1.bf16.msra.mxu0 0
  %348 = vmatprep.subr.bf16.mxu0 0
  %349 = vmatpush1.bf16.msra.mxu0 0
  %350 = vmatprep.mubr.bf16.mxu0 0
  %351 = vmatmul.mubr.bf16.gmra.mrb[0].mxu0 %v49
  %v352 = vpop.f32.mrb[0].mxu0
  %v353 = vadd.f32 0.0, %v352
  %v354 = vpop.f32.mrb[0].mxu0
  %v355 = vpop.f32.mrb[0].mxu0
  %v356 = vadd.f32 0.0, %v355
  %v357 = vpop.f32.mrb[0].mxu0
  %358 = vdwg.mxu0
  %v359 = vsel %vm47, %v353, 0.0
  %360 = vadd.xlane.f32.xlu0 %v359
  %v361 = vpop.xlane.xlu0 %360
  %v362 = vsel %vm95, %v356, 0.0
  %363 = vadd.xlane.f32.xlu0 %v362
  %v364 = vpop.xlane.xlu0 %363
  %v365 = vmul.f32 %v361, %v99
  %v366 = vmul.f32 %v364, %v99
  %v367 = vsub.f32 %v353, %v365
  %v368 = vsub.f32 %v356, %v366
  %v369 = vmul.f32 %v367, %v367
  %v370 = vmul.f32 %v368, %v368
  %v371 = vsel %vm47, %v369, 0.0
  %372 = vadd.xlane.f32.xlu0 %v371
  %v373 = vpop.xlane.xlu0 %372
  %v374 = vsel %vm95, %v370, 0.0
  %375 = vadd.xlane.f32.xlu0 %v374
  %v376 = vpop.xlane.xlu0 %375
  %v377 = vmul.f32 %v373, %v99
  %v378 = vmul.f32 %v376, %v99
  %v379 = vadd.f32 %v377, 1e-05
  %v380 = vadd.f32 %v378, 1e-05
  %v381 = vrsqrt.pop %v379
  %v382 = vrsqrt.pop %v380
  %v383 = vmul.f32 %v367, %v381
  %v384 = vmul.f32 %v368, %v382
  %v385 = vlaneseq
  %v386 = vshrl.u32 %v385, 7
  %v387 = vsub.s32 5, %v386
  %v388 = vrot.slane %v22, %v387
  %v389 = vmul.f32 %v383, %v388
  %v390 = vmul.f32 %v384, %v388
  %v391 = vlaneseq
  %v392 = vshrl.u32 %v391, 7
  %v393 = vsub.s32 6, %v392
  %v394 = vrot.slane %v22, %v393
  %v395 = vadd.f32 %v389, %v394
  %v396 = vadd.f32 %v390, %v394
  %v397 = vmax.f32 %v395, 0.0
  %v398 = vmax.f32 %v396, 0.0
  %v399 = vpack.c.bf16 %v398, %v397
  %v404 = vunpack.c.l.b16 %v302
  %v405 = vunpack.c.l.b16 %v303
  %v406 = vunpack.c.l.b16 %v304
  %v407 = vunpack.c.l.b16 %v305
  %v408 = vpack.c.b16 %v405, %v404
  %v409 = vpack.c.b16 %v407, %v406
  %v413 = vsel %vm47, %v399, 0
  %415 = vmatprep.subr.bf16.mxu0 0
  %416 = vmatpush1.bf16.msra.mxu0 %v408
  %417 = vmatprep.subr.bf16.mxu0 0
  %418 = vmatpush1.bf16.msra.mxu0 %v409
  %419 = vmatprep.subr.bf16.mxu0 0
  %420 = vmatpush1.bf16.msra.mxu0 0
  %421 = vmatprep.subr.bf16.mxu0 0
  %422 = vmatpush1.bf16.msra.mxu0 0
  %423 = vmatprep.subr.bf16.mxu0 0
  %424 = vmatpush1.bf16.msra.mxu0 0
  %425 = vmatprep.subr.bf16.mxu0 0
  %426 = vmatpush1.bf16.msra.mxu0 0
  %427 = vmatprep.subr.bf16.mxu0 0
  %428 = vmatpush1.bf16.msra.mxu0 0
  %429 = vmatprep.subr.bf16.mxu0 0
  %430 = vmatpush1.bf16.msra.mxu0 0
  %431 = vmatprep.subr.bf16.mxu0 0
  %432 = vmatpush1.bf16.msra.mxu0 0
  %433 = vmatprep.subr.bf16.mxu0 0
  %434 = vmatpush1.bf16.msra.mxu0 0
  %435 = vmatprep.subr.bf16.mxu0 0
  %436 = vmatpush1.bf16.msra.mxu0 0
  %437 = vmatprep.subr.bf16.mxu0 0
  %438 = vmatpush1.bf16.msra.mxu0 0
  %439 = vmatprep.subr.bf16.mxu0 0
  %440 = vmatpush1.bf16.msra.mxu0 0
  %441 = vmatprep.subr.bf16.mxu0 0
  %442 = vmatpush1.bf16.msra.mxu0 0
  %443 = vmatprep.subr.bf16.mxu0 0
  %444 = vmatpush1.bf16.msra.mxu0 0
  %445 = vmatprep.subr.bf16.mxu0 0
  %446 = vmatpush1.bf16.msra.mxu0 0
  %447 = vmatprep.mubr.bf16.mxu0 0
  %448 = vmatmul.mubr.bf16.gmra.mrb[0].mxu0 %v413
  %v449 = vpop.f32.mrb[0].mxu0
  %v450 = vadd.f32 0.0, %v449
  %v451 = vpop.f32.mrb[0].mxu0
  %v452 = vpop.f32.mrb[0].mxu0
  %v453 = vadd.f32 0.0, %v452
  %v454 = vpop.f32.mrb[0].mxu0
  %455 = vdwg.mxu0
  %v456 = vsel %vm47, %v450, 0.0
  %457 = vadd.xlane.f32.xlu0 %v456
  %v458 = vpop.xlane.xlu0 %457
  %v459 = vsel %vm95, %v453, 0.0
  %460 = vadd.xlane.f32.xlu0 %v459
  %v461 = vpop.xlane.xlu0 %460
  %v462 = vmul.f32 %v458, %v99
  %v463 = vmul.f32 %v461, %v99
  %v464 = vsub.f32 %v450, %v462
  %v465 = vsub.f32 %v453, %v463
  %v466 = vmul.f32 %v464, %v464
  %v467 = vmul.f32 %v465, %v465
  %v468 = vsel %vm47, %v466, 0.0
  %469 = vadd.xlane.f32.xlu0 %v468
  %v470 = vpop.xlane.xlu0 %469
  %v471 = vsel %vm95, %v467, 0.0
  %472 = vadd.xlane.f32.xlu0 %v471
  %v473 = vpop.xlane.xlu0 %472
  %v474 = vmul.f32 %v470, %v99
  %v475 = vmul.f32 %v473, %v99
  %v476 = vadd.f32 %v474, 1e-05
  %v477 = vadd.f32 %v475, 1e-05
  %v478 = vrsqrt.pop %v476
  %v479 = vrsqrt.pop %v477
  %v480 = vmul.f32 %v464, %v478
  %v481 = vmul.f32 %v465, %v479
  %v482 = vlaneseq
  %v483 = vshrl.u32 %v482, 7
  %v484 = vsub.s32 7, %v483
  %v485 = vrot.slane %v22, %v484
  %v486 = vmul.f32 %v480, %v485
  %v487 = vmul.f32 %v481, %v485
  %v488 = vlaneseq
  %v489 = vshrl.u32 %v488, 7
  %v490 = vsub.s32 0, %v489
  %v491 = vrot.slane %v23, %v490
  %v492 = vadd.f32 %v486, %v491
  %v493 = vadd.f32 %v487, %v491
  %v494 = vadd.f32 %v492, %v20
  %v495 = vadd.f32 %v493, %v21
  %v496 = vmax.f32 %v494, 0.0
  %v497 = vmax.f32 %v495, 0.0
  %s498 = scalar_lea.vmem %s2, 16
  %v499 = vld [vmem:[%s498] sm:$0xf]
  %v500 = vld [vmem:[%s498 + $0x4] sm:$0xf]
  %v501 = vld [vmem:[%s498 + $0x8] sm:$0xf]
  %v502 = vld [vmem:[%s498 + $0xc] sm:$0xf]
  %v503 = vpack.c.bf16 %v497, %v496
  %v504 = vlaneseq
  %v505 = vshrl.u32 %v504, 7
  %v506 = vsub.s32 1, %v505
  %v507 = vrot.slane %v23, %v506
  %v512 = vunpack.c.l.b16 %v499
  %v513 = vunpack.c.l.b16 %v500
  %v514 = vunpack.c.l.b16 %v501
  %v515 = vunpack.c.l.b16 %v502
  %v516 = vpack.c.b16 %v513, %v512
  %v517 = vpack.c.b16 %v515, %v514
  %v521 = vsel %vm47, %v503, 0
  %523 = vmatprep.subr.bf16.mxu0 0
  %524 = vmatpush1.bf16.msra.mxu0 %v516
  %525 = vmatprep.subr.bf16.mxu0 0
  %526 = vmatpush1.bf16.msra.mxu0 %v517
  %527 = vmatprep.subr.bf16.mxu0 0
  %528 = vmatpush1.bf16.msra.mxu0 0
  %529 = vmatprep.subr.bf16.mxu0 0
  %530 = vmatpush1.bf16.msra.mxu0 0
  %531 = vmatprep.subr.bf16.mxu0 0
  %532 = vmatpush1.bf16.msra.mxu0 0
  %533 = vmatprep.subr.bf16.mxu0 0
  %534 = vmatpush1.bf16.msra.mxu0 0
  %535 = vmatprep.subr.bf16.mxu0 0
  %536 = vmatpush1.bf16.msra.mxu0 0
  %537 = vmatprep.subr.bf16.mxu0 0
  %538 = vmatpush1.bf16.msra.mxu0 0
  %539 = vmatprep.subr.bf16.mxu0 0
  %540 = vmatpush1.bf16.msra.mxu0 0
  %541 = vmatprep.subr.bf16.mxu0 0
  %542 = vmatpush1.bf16.msra.mxu0 0
  %543 = vmatprep.subr.bf16.mxu0 0
  %544 = vmatpush1.bf16.msra.mxu0 0
  %545 = vmatprep.subr.bf16.mxu0 0
  %546 = vmatpush1.bf16.msra.mxu0 0
  %547 = vmatprep.subr.bf16.mxu0 0
  %548 = vmatpush1.bf16.msra.mxu0 0
  %549 = vmatprep.subr.bf16.mxu0 0
  %550 = vmatpush1.bf16.msra.mxu0 0
  %551 = vmatprep.subr.bf16.mxu0 0
  %552 = vmatpush1.bf16.msra.mxu0 0
  %553 = vmatprep.subr.bf16.mxu0 0
  %554 = vmatpush1.bf16.msra.mxu0 0
  %555 = vmatprep.mubr.bf16.mxu0 0
  %556 = vmatmul.mubr.bf16.gmra.mrb[0].mxu0 %v521
  %v557 = vpop.f32.mrb[0].mxu0
  %v558 = vadd.f32 %v507, %v557
  %v559 = vpop.f32.mrb[0].mxu0
  %v560 = vpop.f32.mrb[0].mxu0
  %v561 = vadd.f32 %v507, %v560
  %v562 = vpop.f32.mrb[0].mxu0
  %563 = vdwg.mxu0
  %v564 = vld [vmem:[%s1 + $0x40] sm:$0xf]
  %v565 = vld [vmem:[%s1 + $0x44] sm:$0xf]
  %v566 = vld [vmem:[%s1 + $0x48] sm:$0xf]
  %v567 = vld [vmem:[%s1 + $0x4c] sm:$0xf]
  %v568 = vld [vmem:[%s1 + $0x50] sm:$0xf]
  %v569 = vld [vmem:[%s1 + $0x54] sm:$0xf]
  %v570 = vld [vmem:[%s1 + $0x58] sm:$0xf]
  %v571 = vld [vmem:[%s1 + $0x5c] sm:$0xf]
  %v576 = vunpack.c.l.b16 %v564
  %v577 = vunpack.c.l.b16 %v565
  %v578 = vunpack.c.l.b16 %v566
  %v579 = vunpack.c.l.b16 %v567
  %v580 = vpack.c.b16 %v577, %v576
  %v581 = vpack.c.b16 %v579, %v578
  %584 = vmatprep.subr.bf16.mxu0 0
  %585 = vmatpush1.bf16.msra.mxu0 %v580
  %586 = vmatprep.subr.bf16.mxu0 0
  %587 = vmatpush1.bf16.msra.mxu0 %v581
  %588 = vmatprep.subr.bf16.mxu0 0
  %589 = vmatpush1.bf16.msra.mxu0 0
  %590 = vmatprep.subr.bf16.mxu0 0
  %591 = vmatpush1.bf16.msra.mxu0 0
  %592 = vmatprep.subr.bf16.mxu0 0
  %593 = vmatpush1.bf16.msra.mxu0 0
  %594 = vmatprep.subr.bf16.mxu0 0
  %595 = vmatpush1.bf16.msra.mxu0 0
  %596 = vmatprep.subr.bf16.mxu0 0
  %597 = vmatpush1.bf16.msra.mxu0 0
  %598 = vmatprep.subr.bf16.mxu0 0
  %599 = vmatpush1.bf16.msra.mxu0 0
  %600 = vmatprep.subr.bf16.mxu0 0
  %601 = vmatpush1.bf16.msra.mxu0 0
  %602 = vmatprep.subr.bf16.mxu0 0
  %603 = vmatpush1.bf16.msra.mxu0 0
  %604 = vmatprep.subr.bf16.mxu0 0
  %605 = vmatpush1.bf16.msra.mxu0 0
  %606 = vmatprep.subr.bf16.mxu0 0
  %607 = vmatpush1.bf16.msra.mxu0 0
  %608 = vmatprep.subr.bf16.mxu0 0
  %609 = vmatpush1.bf16.msra.mxu0 0
  %610 = vmatprep.subr.bf16.mxu0 0
  %611 = vmatpush1.bf16.msra.mxu0 0
  %612 = vmatprep.subr.bf16.mxu0 0
  %613 = vmatpush1.bf16.msra.mxu0 0
  %614 = vmatprep.subr.bf16.mxu0 0
  %615 = vmatpush1.bf16.msra.mxu0 0
  %616 = vmatprep.mubr.bf16.mxu0 0
  %617 = vmatmul.mubr.bf16.gmra.mrb[0].mxu0 %v49
  %v618 = vpop.f32.mrb[0].mxu0
  %v619 = vadd.f32 0.0, %v618
  %v620 = vpop.f32.mrb[0].mxu0
  %v621 = vpop.f32.mrb[0].mxu0
  %v622 = vadd.f32 0.0, %v621
  %v623 = vpop.f32.mrb[0].mxu0
  %624 = vdwg.mxu0
  %v625 = vsel %vm47, %v619, 0.0
  %626 = vadd.xlane.f32.xlu0 %v625
  %v627 = vpop.xlane.xlu0 %626
  %v628 = vsel %vm95, %v622, 0.0
  %629 = vadd.xlane.f32.xlu0 %v628
  %v630 = vpop.xlane.xlu0 %629
  %v631 = vmul.f32 %v627, %v99
  %v632 = vmul.f32 %v630, %v99
  %v633 = vsub.f32 %v619, %v631
  %v634 = vsub.f32 %v622, %v632
  %v635 = vmul.f32 %v633, %v633
  %v636 = vmul.f32 %v634, %v634
  %v637 = vsel %vm47, %v635, 0.0
  %638 = vadd.xlane.f32.xlu0 %v637
  %v639 = vpop.xlane.xlu0 %638
  %v640 = vsel %vm95, %v636, 0.0
  %641 = vadd.xlane.f32.xlu0 %v640
  %v642 = vpop.xlane.xlu0 %641
  %v643 = vmul.f32 %v639, %v99
  %v644 = vmul.f32 %v642, %v99
  %v645 = vadd.f32 %v643, 1e-05
  %v646 = vadd.f32 %v644, 1e-05
  %v647 = vrsqrt.pop %v645
  %v648 = vrsqrt.pop %v646
  %v649 = vmul.f32 %v633, %v647
  %v650 = vmul.f32 %v634, %v648
  %v651 = vlaneseq
  %v652 = vshrl.u32 %v651, 7
  %v653 = vsub.s32 2, %v652
  %v654 = vrot.slane %v23, %v653
  %v655 = vmul.f32 %v649, %v654
  %v656 = vmul.f32 %v650, %v654
  %v657 = vlaneseq
  %v658 = vshrl.u32 %v657, 7
  %v659 = vsub.s32 3, %v658
  %v660 = vrot.slane %v23, %v659
  %v661 = vadd.f32 %v655, %v660
  %v662 = vadd.f32 %v656, %v660
  %v663 = vmax.f32 %v661, 0.0
  %v664 = vmax.f32 %v662, 0.0
  %v665 = vpack.c.bf16 %v664, %v663
  %v670 = vunpack.c.l.b16 %v568
  %v671 = vunpack.c.l.b16 %v569
  %v672 = vunpack.c.l.b16 %v570
  %v673 = vunpack.c.l.b16 %v571
  %v674 = vpack.c.b16 %v671, %v670
  %v675 = vpack.c.b16 %v673, %v672
  %v679 = vsel %vm47, %v665, 0
  %681 = vmatprep.subr.bf16.mxu0 0
  %682 = vmatpush1.bf16.msra.mxu0 %v674
  %683 = vmatprep.subr.bf16.mxu0 0
  %684 = vmatpush1.bf16.msra.mxu0 %v675
  %685 = vmatprep.subr.bf16.mxu0 0
  %686 = vmatpush1.bf16.msra.mxu0 0
  %687 = vmatprep.subr.bf16.mxu0 0
  %688 = vmatpush1.bf16.msra.mxu0 0
  %689 = vmatprep.subr.bf16.mxu0 0
  %690 = vmatpush1.bf16.msra.mxu0 0
  %691 = vmatprep.subr.bf16.mxu0 0
  %692 = vmatpush1.bf16.msra.mxu0 0
  %693 = vmatprep.subr.bf16.mxu0 0
  %694 = vmatpush1.bf16.msra.mxu0 0
  %695 = vmatprep.subr.bf16.mxu0 0
  %696 = vmatpush1.bf16.msra.mxu0 0
  %697 = vmatprep.subr.bf16.mxu0 0
  %698 = vmatpush1.bf16.msra.mxu0 0
  %699 = vmatprep.subr.bf16.mxu0 0
  %700 = vmatpush1.bf16.msra.mxu0 0
  %701 = vmatprep.subr.bf16.mxu0 0
  %702 = vmatpush1.bf16.msra.mxu0 0
  %703 = vmatprep.subr.bf16.mxu0 0
  %704 = vmatpush1.bf16.msra.mxu0 0
  %705 = vmatprep.subr.bf16.mxu0 0
  %706 = vmatpush1.bf16.msra.mxu0 0
  %707 = vmatprep.subr.bf16.mxu0 0
  %708 = vmatpush1.bf16.msra.mxu0 0
  %709 = vmatprep.subr.bf16.mxu0 0
  %710 = vmatpush1.bf16.msra.mxu0 0
  %711 = vmatprep.subr.bf16.mxu0 0
  %712 = vmatpush1.bf16.msra.mxu0 0
  %713 = vmatprep.mubr.bf16.mxu0 0
  %714 = vmatmul.mubr.bf16.gmra.mrb[0].mxu0 %v679
  %v715 = vpop.f32.mrb[0].mxu0
  %v716 = vadd.f32 0.0, %v715
  %v717 = vpop.f32.mrb[0].mxu0
  %v718 = vpop.f32.mrb[0].mxu0
  %v719 = vadd.f32 0.0, %v718
  %v720 = vpop.f32.mrb[0].mxu0
  %721 = vdwg.mxu0
  %v722 = vsel %vm47, %v716, 0.0
  %723 = vadd.xlane.f32.xlu0 %v722
  %v724 = vpop.xlane.xlu0 %723
  %v725 = vsel %vm95, %v719, 0.0
  %726 = vadd.xlane.f32.xlu0 %v725
  %v727 = vpop.xlane.xlu0 %726
  %v728 = vmul.f32 %v724, %v99
  %v729 = vmul.f32 %v727, %v99
  %v730 = vsub.f32 %v716, %v728
  %v731 = vsub.f32 %v719, %v729
  %v732 = vmul.f32 %v730, %v730
  %v733 = vmul.f32 %v731, %v731
  %v734 = vsel %vm47, %v732, 0.0
  %735 = vadd.xlane.f32.xlu0 %v734
  %v736 = vpop.xlane.xlu0 %735
  %v737 = vsel %vm95, %v733, 0.0
  %738 = vadd.xlane.f32.xlu0 %v737
  %v739 = vpop.xlane.xlu0 %738
  %v740 = vmul.f32 %v736, %v99
  %v741 = vmul.f32 %v739, %v99
  %v742 = vadd.f32 %v740, 1e-05
  %v743 = vadd.f32 %v741, 1e-05
  %v744 = vrsqrt.pop %v742
  %v745 = vrsqrt.pop %v743
  %v746 = vmul.f32 %v730, %v744
  %v747 = vmul.f32 %v731, %v745
  %v748 = vlaneseq
  %v749 = vshrl.u32 %v748, 7
  %v750 = vsub.s32 4, %v749
  %v751 = vrot.slane %v23, %v750
  %v752 = vmul.f32 %v746, %v751
  %v753 = vmul.f32 %v747, %v751
  %v754 = vlaneseq
  %v755 = vshrl.u32 %v754, 7
  %v756 = vsub.s32 5, %v755
  %v757 = vrot.slane %v23, %v756
  %v758 = vadd.f32 %v752, %v757
  %v759 = vadd.f32 %v753, %v757
  %v760 = vadd.f32 %v758, %v20
  %v761 = vadd.f32 %v759, %v21
  %v762 = vmax.f32 %v760, 0.0
  %v763 = vmax.f32 %v761, 0.0
  %s764 = scalar_lea.vmem %s2, 32
  %v765 = vld [vmem:[%s764] sm:$0xf]
  %v766 = vld [vmem:[%s764 + $0x4] sm:$0xf]
  %v767 = vld [vmem:[%s764 + $0x8] sm:$0xf]
  %v768 = vld [vmem:[%s764 + $0xc] sm:$0xf]
  %v769 = vpack.c.bf16 %v763, %v762
  %v770 = vlaneseq
  %v771 = vshrl.u32 %v770, 7
  %v772 = vsub.s32 6, %v771
  %v773 = vrot.slane %v23, %v772
  %v778 = vunpack.c.l.b16 %v765
  %v779 = vunpack.c.l.b16 %v766
  %v780 = vunpack.c.l.b16 %v767
  %v781 = vunpack.c.l.b16 %v768
  %v782 = vpack.c.b16 %v779, %v778
  %v783 = vpack.c.b16 %v781, %v780
  %v787 = vsel %vm47, %v769, 0
  %789 = vmatprep.subr.bf16.mxu0 0
  %790 = vmatpush1.bf16.msra.mxu0 %v782
  %791 = vmatprep.subr.bf16.mxu0 0
  %792 = vmatpush1.bf16.msra.mxu0 %v783
  %793 = vmatprep.subr.bf16.mxu0 0
  %794 = vmatpush1.bf16.msra.mxu0 0
  %795 = vmatprep.subr.bf16.mxu0 0
  %796 = vmatpush1.bf16.msra.mxu0 0
  %797 = vmatprep.subr.bf16.mxu0 0
  %798 = vmatpush1.bf16.msra.mxu0 0
  %799 = vmatprep.subr.bf16.mxu0 0
  %800 = vmatpush1.bf16.msra.mxu0 0
  %801 = vmatprep.subr.bf16.mxu0 0
  %802 = vmatpush1.bf16.msra.mxu0 0
  %803 = vmatprep.subr.bf16.mxu0 0
  %804 = vmatpush1.bf16.msra.mxu0 0
  %805 = vmatprep.subr.bf16.mxu0 0
  %806 = vmatpush1.bf16.msra.mxu0 0
  %807 = vmatprep.subr.bf16.mxu0 0
  %808 = vmatpush1.bf16.msra.mxu0 0
  %809 = vmatprep.subr.bf16.mxu0 0
  %810 = vmatpush1.bf16.msra.mxu0 0
  %811 = vmatprep.subr.bf16.mxu0 0
  %812 = vmatpush1.bf16.msra.mxu0 0
  %813 = vmatprep.subr.bf16.mxu0 0
  %814 = vmatpush1.bf16.msra.mxu0 0
  %815 = vmatprep.subr.bf16.mxu0 0
  %816 = vmatpush1.bf16.msra.mxu0 0
  %817 = vmatprep.subr.bf16.mxu0 0
  %818 = vmatpush1.bf16.msra.mxu0 0
  %819 = vmatprep.subr.bf16.mxu0 0
  %820 = vmatpush1.bf16.msra.mxu0 0
  %821 = vmatprep.mubr.bf16.mxu0 0
  %822 = vmatmul.mubr.bf16.gmra.mrb[0].mxu0 %v787
  %v823 = vpop.f32.mrb[0].mxu0
  %v824 = vadd.f32 %v773, %v823
  %v825 = vpop.f32.mrb[0].mxu0
  %v826 = vpop.f32.mrb[0].mxu0
  %v827 = vadd.f32 %v773, %v826
  %v828 = vpop.f32.mrb[0].mxu0
  %829 = vdwg.mxu0
  %vm832 = vcmask 1041408
  %v833 = vrot.slane %v558, 6
  %v834 = vrot.slane %v561, 6
  %v835 = vsel %vm832, %v833, %v834
  %vm840 = vcmask 1043456
  %v841 = vrot.slane %v824, 4
  %v842 = vrot.slane %v827, 4
  %v843 = vsel %vm840, %v841, %v842
  %v846 = vsel %vm832, %v295, %v833
  %v847 = vsel %vm840, %v835, %v841
  %vm848 = vcmask 80896
  %849 = vst.msk [vmem:[%s4] sm:$0xff] %vm848, %v292
  %850 = vst.msk [vmem:[%s4 + $0x8] sm:$0xff] %vm848, %v846
  %851 = vst.msk [vmem:[%s4 + $0x10] sm:$0xff] %vm848, %v847
  %vm852 = vcmask 78848
  %853 = vst.msk [vmem:[%s4 + $0x18] sm:$0x3f] %vm852, %v843
  %v854 = vlaneseq
  %v855 = vand.u32 %v854, 127
  %vm856 = vcmp.lt.s32.totalorder %v855, 0
  %v857 = vsub.s32 0, %v855
  %v858 = vsel %vm856, %v857, %v855
  %v859 = vshrl.u32 %v858, 1
  %v860 = vand.u32 %v858, 1
  %v861 = vsub.s32 0, %v860
  %v862 = vsel %vm856, %v861, %v860
  %vm863 = vcmp.ne.s32.totalorder %v862, 0
  %vm864 = vcmp.lt.s32.totalorder %v862, 0
  %vm865 = vmand %vm864, %vm863
  %v866 = vadd.s32 %v862, 2
  %v867 = vsel %vm865, %v866, %v862
  %vm868 = vcmp.eq.s32.totalorder %v867, 0
  %v869 = vsel %vm868, 1, 0
  %v870 = vcvt.s32.f32 %v869
  %v871 = vmul.f32 %v292, %v870
  %v872 = vmul.f32 %v846, %v870
  %v873 = vmul.f32 %v847, %v870
  %v874 = vmul.f32 %v843, %v870
  %v875 = vsel %vm848, %v871, 0.0
  %876 = vadd.xlane.f32.xlu0 %v875
  %v877 = vpop.xlane.xlu0 %876
  %v878 = vsel %vm848, %v872, 0.0
  %879 = vadd.xlane.f32.xlu0 %v878
  %v880 = vpop.xlane.xlu0 %879
  %v881 = vsel %vm848, %v873, 0.0
  %882 = vadd.xlane.f32.xlu0 %v881
  %v883 = vpop.xlane.xlu0 %882
  %v884 = vsel %vm852, %v874, 0.0
  %885 = vadd.xlane.f32.xlu0 %v884
  %v886 = vpop.xlane.xlu0 %885
  %v887 = vsub.f32 0.0, %v877
  %v888 = vsub.f32 0.0, %v880
  %v889 = vsub.f32 0.0, %v883
  %v890 = vsub.f32 0.0, %v886
  %v891 = vsub.f32 1.0, %v870
  %v892 = vmul.f32 %v292, %v891
  %v893 = vmul.f32 %v846, %v891
  %v894 = vmul.f32 %v847, %v891
  %v895 = vmul.f32 %v843, %v891
  %v896 = vsel %vm848, %v892, 0.0
  %897 = vadd.xlane.f32.xlu0 %v896
  %v898 = vpop.xlane.xlu0 %897
  %v899 = vsel %vm848, %v893, 0.0
  %900 = vadd.xlane.f32.xlu0 %v899
  %v901 = vpop.xlane.xlu0 %900
  %v902 = vsel %vm848, %v894, 0.0
  %903 = vadd.xlane.f32.xlu0 %v902
  %v904 = vpop.xlane.xlu0 %903
  %v905 = vsel %vm852, %v895, 0.0
  %906 = vadd.xlane.f32.xlu0 %v905
  %v907 = vpop.xlane.xlu0 %906
  %v908 = vsub.f32 0.0, %v898
  %v909 = vsub.f32 0.0, %v901
  %v910 = vsub.f32 0.0, %v904
  %v911 = vsub.f32 0.0, %v907
  %v912 = vlaneseq
  %v913 = vshrl.u32 %v912, 7
  %v914 = vsub.s32 7, %v913
  %v915 = vrot.slane %v23, %v914
  %v916 = vmul.f32 %v887, %v915
  %v917 = vmul.f32 %v888, %v915
  %v918 = vmul.f32 %v889, %v915
  %v919 = vmul.f32 %v890, %v915
  %v920 = vlaneseq
  %v921 = vshrl.u32 %v920, 7
  %v922 = vsub.s32 0, %v921
  %v923 = vrot.slane %v24, %v922
  %v924 = vmul.f32 %v908, %v923
  %v925 = vmul.f32 %v909, %v923
  %v926 = vmul.f32 %v910, %v923
  %v927 = vmul.f32 %v911, %v923
  %v928 = vadd.f32 %v916, %v924
  %v929 = vadd.f32 %v917, %v925
  %v930 = vadd.f32 %v918, %v926
  %v931 = vadd.f32 %v919, %v927
  %v932 = vlaneseq
  %v933 = vshrl.u32 %v932, 7
  %v934 = vsub.s32 1, %v933
  %v935 = vrot.slane %v24, %v934
  %v936 = vadd.f32 %v928, %v935
  %v937 = vadd.f32 %v929, %v935
  %v938 = vadd.f32 %v930, %v935
  %v939 = vadd.f32 %v931, %v935
  %v940 = vmax.f32 %v936, 0.0
  %v941 = vmax.f32 %v937, 0.0
  %v942 = vmax.f32 %v938, 0.0
  %v943 = vmax.f32 %v939, 0.0
  %v944 = vld [vmem:[%s1 + $0x60] sm:$0xf]
  %v945 = vld [vmem:[%s1 + $0x64] sm:$0xf]
  %v946 = vld [vmem:[%s1 + $0x68] sm:$0xf]
  %v947 = vld [vmem:[%s1 + $0x6c] sm:$0xf]
  %v948 = vpack.c.bf16 %v941, %v940
  %v949 = vpack.c.bf16 %v943, %v942
  %v954 = vunpack.c.l.b16 %v944
  %v955 = vunpack.c.l.b16 %v945
  %v956 = vunpack.c.l.b16 %v946
  %v957 = vunpack.c.l.b16 %v947
  %v958 = vpack.c.b16 %v955, %v954
  %v959 = vpack.c.b16 %v957, %v956
  %v963 = vsel %vm47, %v948, 0
  %v966 = vsel %vm47, %v949, 0
  %968 = vmatprep.subr.bf16.mxu0 0
  %969 = vmatpush1.bf16.msra.mxu0 %v958
  %970 = vmatprep.subr.bf16.mxu0 0
  %971 = vmatpush1.bf16.msra.mxu0 %v959
  %972 = vmatprep.subr.bf16.mxu0 0
  %973 = vmatpush1.bf16.msra.mxu0 0
  %974 = vmatprep.subr.bf16.mxu0 0
  %975 = vmatpush1.bf16.msra.mxu0 0
  %976 = vmatprep.subr.bf16.mxu0 0
  %977 = vmatpush1.bf16.msra.mxu0 0
  %978 = vmatprep.subr.bf16.mxu0 0
  %979 = vmatpush1.bf16.msra.mxu0 0
  %980 = vmatprep.subr.bf16.mxu0 0
  %981 = vmatpush1.bf16.msra.mxu0 0
  %982 = vmatprep.subr.bf16.mxu0 0
  %983 = vmatpush1.bf16.msra.mxu0 0
  %984 = vmatprep.subr.bf16.mxu0 0
  %985 = vmatpush1.bf16.msra.mxu0 0
  %986 = vmatprep.subr.bf16.mxu0 0
  %987 = vmatpush1.bf16.msra.mxu0 0
  %988 = vmatprep.subr.bf16.mxu0 0
  %989 = vmatpush1.bf16.msra.mxu0 0
  %990 = vmatprep.subr.bf16.mxu0 0
  %991 = vmatpush1.bf16.msra.mxu0 0
  %992 = vmatprep.subr.bf16.mxu0 0
  %993 = vmatpush1.bf16.msra.mxu0 0
  %994 = vmatprep.subr.bf16.mxu0 0
  %995 = vmatpush1.bf16.msra.mxu0 0
  %996 = vmatprep.subr.bf16.mxu0 0
  %997 = vmatpush1.bf16.msra.mxu0 0
  %998 = vmatprep.subr.bf16.mxu0 0
  %999 = vmatpush1.bf16.msra.mxu0 0
  %1000 = vmatprep.mubr.bf16.mxu0 0
  %1001 = vmatmul.mubr.bf16.gmra.mrb[0].mxu0 %v963
  %v1002 = vpop.f32.mrb[0].mxu0
  %v1003 = vadd.f32 0.0, %v1002
  %v1004 = vpop.f32.mrb[0].mxu0
  %v1005 = vpop.f32.mrb[0].mxu0
  %v1006 = vadd.f32 0.0, %v1005
  %v1007 = vpop.f32.mrb[0].mxu0
  %1008 = vmatprep.mubr.bf16.mxu0 0
  %1009 = vmatmul.mubr.bf16.gmra.mrb[0].mxu0 %v966
  %v1010 = vpop.f32.mrb[0].mxu0
  %v1011 = vadd.f32 0.0, %v1010
  %v1012 = vpop.f32.mrb[0].mxu0
  %v1013 = vpop.f32.mrb[0].mxu0
  %v1014 = vadd.f32 0.0, %v1013
  %v1015 = vpop.f32.mrb[0].mxu0
  %1016 = vdwg.mxu0
  %v1017 = vsel %vm47, %v1003, 0.0
  %1018 = vadd.xlane.f32.xlu0 %v1017
  %v1019 = vpop.xlane.xlu0 %1018
  %v1020 = vsel %vm47, %v1006, 0.0
  %1021 = vadd.xlane.f32.xlu0 %v1020
  %v1022 = vpop.xlane.xlu0 %1021
  %v1023 = vsel %vm47, %v1011, 0.0
  %1024 = vadd.xlane.f32.xlu0 %v1023
  %v1025 = vpop.xlane.xlu0 %1024
  %vm1026 = vcmask 259072
  %v1027 = vsel %vm1026, %v1014, 0.0
  %1028 = vadd.xlane.f32.xlu0 %v1027
  %v1029 = vpop.xlane.xlu0 %1028
  %v1030 = vmul.f32 %v1019, %v99
  %v1031 = vmul.f32 %v1022, %v99
  %v1032 = vmul.f32 %v1025, %v99
  %v1033 = vmul.f32 %v1029, %v99
  %v1034 = vsub.f32 %v1003, %v1030
  %v1035 = vsub.f32 %v1006, %v1031
  %v1036 = vsub.f32 %v1011, %v1032
  %v1037 = vsub.f32 %v1014, %v1033
  %v1038 = vmul.f32 %v1034, %v1034
  %v1039 = vmul.f32 %v1035, %v1035
  %v1040 = vmul.f32 %v1036, %v1036
  %v1041 = vmul.f32 %v1037, %v1037
  %v1042 = vsel %vm47, %v1038, 0.0
  %1043 = vadd.xlane.f32.xlu0 %v1042
  %v1044 = vpop.xlane.xlu0 %1043
  %v1045 = vsel %vm47, %v1039, 0.0
  %1046 = vadd.xlane.f32.xlu0 %v1045
  %v1047 = vpop.xlane.xlu0 %1046
  %v1048 = vsel %vm47, %v1040, 0.0
  %1049 = vadd.xlane.f32.xlu0 %v1048
  %v1050 = vpop.xlane.xlu0 %1049
  %v1051 = vsel %vm1026, %v1041, 0.0
  %1052 = vadd.xlane.f32.xlu0 %v1051
  %v1053 = vpop.xlane.xlu0 %1052
  %v1054 = vmul.f32 %v1044, %v99
  %v1055 = vmul.f32 %v1047, %v99
  %v1056 = vmul.f32 %v1050, %v99
  %v1057 = vmul.f32 %v1053, %v99
  %v1058 = vadd.f32 %v1054, 1e-05
  %v1059 = vadd.f32 %v1055, 1e-05
  %v1060 = vadd.f32 %v1056, 1e-05
  %v1061 = vadd.f32 %v1057, 1e-05
  %v1062 = vrsqrt.pop %v1058
  %v1063 = vrsqrt.pop %v1059
  %v1064 = vrsqrt.pop %v1060
  %v1065 = vrsqrt.pop %v1061
  %v1066 = vmul.f32 %v1034, %v1062
  %v1067 = vmul.f32 %v1035, %v1063
  %v1068 = vmul.f32 %v1036, %v1064
  %v1069 = vmul.f32 %v1037, %v1065
  %v1070 = vlaneseq
  %v1071 = vshrl.u32 %v1070, 7
  %v1072 = vsub.s32 2, %v1071
  %v1073 = vrot.slane %v24, %v1072
  %v1074 = vmul.f32 %v1066, %v1073
  %v1075 = vmul.f32 %v1067, %v1073
  %v1076 = vmul.f32 %v1068, %v1073
  %v1077 = vmul.f32 %v1069, %v1073
  %v1078 = vlaneseq
  %v1079 = vshrl.u32 %v1078, 7
  %v1080 = vsub.s32 3, %v1079
  %v1081 = vrot.slane %v24, %v1080
  %v1082 = vadd.f32 %v1074, %v1081
  %v1083 = vadd.f32 %v1075, %v1081
  %v1084 = vadd.f32 %v1076, %v1081
  %v1085 = vadd.f32 %v1077, %v1081
  %v1086 = vmax.f32 %v1082, 0.0
  %v1087 = vmax.f32 %v1083, 0.0
  %v1088 = vmax.f32 %v1084, 0.0
  %v1089 = vmax.f32 %v1085, 0.0
  %v1090 = vld [vmem:[%s1 + $0x80] sm:$0xf]
  %v1091 = vld [vmem:[%s1 + $0x84] sm:$0xf]
  %v1092 = vld [vmem:[%s1 + $0x88] sm:$0xf]
  %v1093 = vld [vmem:[%s1 + $0x8c] sm:$0xf]
  %v1098 = vunpack.c.l.b16 %v1090
  %v1099 = vunpack.c.l.b16 %v1091
  %v1100 = vunpack.c.l.b16 %v1092
  %v1101 = vunpack.c.l.b16 %v1093
  %v1102 = vpack.c.b16 %v1099, %v1098
  %v1103 = vpack.c.b16 %v1101, %v1100
  %1106 = vmatprep.subr.bf16.mxu0 0
  %1107 = vmatpush1.bf16.msra.mxu0 %v1102
  %1108 = vmatprep.subr.bf16.mxu0 0
  %1109 = vmatpush1.bf16.msra.mxu0 %v1103
  %1110 = vmatprep.subr.bf16.mxu0 0
  %1111 = vmatpush1.bf16.msra.mxu0 0
  %1112 = vmatprep.subr.bf16.mxu0 0
  %1113 = vmatpush1.bf16.msra.mxu0 0
  %1114 = vmatprep.subr.bf16.mxu0 0
  %1115 = vmatpush1.bf16.msra.mxu0 0
  %1116 = vmatprep.subr.bf16.mxu0 0
  %1117 = vmatpush1.bf16.msra.mxu0 0
  %1118 = vmatprep.subr.bf16.mxu0 0
  %1119 = vmatpush1.bf16.msra.mxu0 0
  %1120 = vmatprep.subr.bf16.mxu0 0
  %1121 = vmatpush1.bf16.msra.mxu0 0
  %1122 = vmatprep.subr.bf16.mxu0 0
  %1123 = vmatpush1.bf16.msra.mxu0 0
  %1124 = vmatprep.subr.bf16.mxu0 0
  %1125 = vmatpush1.bf16.msra.mxu0 0
  %1126 = vmatprep.subr.bf16.mxu0 0
  %1127 = vmatpush1.bf16.msra.mxu0 0
  %1128 = vmatprep.subr.bf16.mxu0 0
  %1129 = vmatpush1.bf16.msra.mxu0 0
  %1130 = vmatprep.subr.bf16.mxu0 0
  %1131 = vmatpush1.bf16.msra.mxu0 0
  %1132 = vmatprep.subr.bf16.mxu0 0
  %1133 = vmatpush1.bf16.msra.mxu0 0
  %1134 = vmatprep.subr.bf16.mxu0 0
  %1135 = vmatpush1.bf16.msra.mxu0 0
  %1136 = vmatprep.subr.bf16.mxu0 0
  %1137 = vmatpush1.bf16.msra.mxu0 0
  %1138 = vmatprep.mubr.bf16.mxu0 0
  %1139 = vmatmul.mubr.bf16.gmra.mrb[0].mxu0 %v49
  %v1140 = vpop.f32.mrb[0].mxu0
  %v1141 = vadd.f32 0.0, %v1140
  %v1142 = vpop.f32.mrb[0].mxu0
  %v1143 = vpop.f32.mrb[0].mxu0
  %v1144 = vadd.f32 0.0, %v1143
  %v1145 = vpop.f32.mrb[0].mxu0
  %1146 = vdwg.mxu0
  %v1149 = vrot.slane %v1141, 6
  %v1150 = vrot.slane %v1144, 6
  %v1151 = vsel %vm832, %v1149, %v1150
  %v1154 = vrot.slane %v1141, 4
  %v1155 = vrot.slane %v1144, 4
  %v1156 = vsel %vm840, %v1154, %v1155
  %v1159 = vsel %vm832, %v1144, %v1149
  %v1160 = vsel %vm840, %v1151, %v1154
  %v1161 = vld [vmem:[%s1 + $0x70] sm:$0xf]
  %v1162 = vld [vmem:[%s1 + $0x74] sm:$0xf]
  %v1163 = vld [vmem:[%s1 + $0x78] sm:$0xf]
  %v1164 = vld [vmem:[%s1 + $0x7c] sm:$0xf]
  %v1165 = vpack.c.bf16 %v1087, %v1086
  %v1166 = vpack.c.bf16 %v1089, %v1088
  %v1171 = vunpack.c.l.b16 %v1161
  %v1172 = vunpack.c.l.b16 %v1162
  %v1173 = vunpack.c.l.b16 %v1163
  %v1174 = vunpack.c.l.b16 %v1164
  %v1175 = vpack.c.b16 %v1172, %v1171
  %v1176 = vpack.c.b16 %v1174, %v1173
  %v1180 = vsel %vm47, %v1165, 0
  %v1183 = vsel %vm47, %v1166, 0
  %1185 = vmatprep.subr.bf16.mxu0 0
  %1186 = vmatpush1.bf16.msra.mxu0 %v1175
  %1187 = vmatprep.subr.bf16.mxu0 0
  %1188 = vmatpush1.bf16.msra.mxu0 %v1176
  %1189 = vmatprep.subr.bf16.mxu0 0
  %1190 = vmatpush1.bf16.msra.mxu0 0
  %1191 = vmatprep.subr.bf16.mxu0 0
  %1192 = vmatpush1.bf16.msra.mxu0 0
  %1193 = vmatprep.subr.bf16.mxu0 0
  %1194 = vmatpush1.bf16.msra.mxu0 0
  %1195 = vmatprep.subr.bf16.mxu0 0
  %1196 = vmatpush1.bf16.msra.mxu0 0
  %1197 = vmatprep.subr.bf16.mxu0 0
  %1198 = vmatpush1.bf16.msra.mxu0 0
  %1199 = vmatprep.subr.bf16.mxu0 0
  %1200 = vmatpush1.bf16.msra.mxu0 0
  %1201 = vmatprep.subr.bf16.mxu0 0
  %1202 = vmatpush1.bf16.msra.mxu0 0
  %1203 = vmatprep.subr.bf16.mxu0 0
  %1204 = vmatpush1.bf16.msra.mxu0 0
  %1205 = vmatprep.subr.bf16.mxu0 0
  %1206 = vmatpush1.bf16.msra.mxu0 0
  %1207 = vmatprep.subr.bf16.mxu0 0
  %1208 = vmatpush1.bf16.msra.mxu0 0
  %1209 = vmatprep.subr.bf16.mxu0 0
  %1210 = vmatpush1.bf16.msra.mxu0 0
  %1211 = vmatprep.subr.bf16.mxu0 0
  %1212 = vmatpush1.bf16.msra.mxu0 0
  %1213 = vmatprep.subr.bf16.mxu0 0
  %1214 = vmatpush1.bf16.msra.mxu0 0
  %1215 = vmatprep.subr.bf16.mxu0 0
  %1216 = vmatpush1.bf16.msra.mxu0 0
  %1217 = vmatprep.mubr.bf16.mxu0 0
  %1218 = vmatmul.mubr.bf16.gmra.mrb[0].mxu0 %v1180
  %v1219 = vpop.f32.mrb[0].mxu0
  %v1220 = vadd.f32 %v1141, %v1219
  %v1221 = vpop.f32.mrb[0].mxu0
  %v1222 = vpop.f32.mrb[0].mxu0
  %v1223 = vadd.f32 %v1159, %v1222
  %v1224 = vpop.f32.mrb[0].mxu0
  %1225 = vmatprep.mubr.bf16.mxu0 0
  %1226 = vmatmul.mubr.bf16.gmra.mrb[0].mxu0 %v1183
  %v1227 = vpop.f32.mrb[0].mxu0
  %v1228 = vadd.f32 %v1160, %v1227
  %v1229 = vpop.f32.mrb[0].mxu0
  %v1230 = vpop.f32.mrb[0].mxu0
  %v1231 = vadd.f32 %v1156, %v1230
  %v1232 = vpop.f32.mrb[0].mxu0
  %1233 = vdwg.mxu0
  %v1234 = vsel %vm47, %v1220, 0.0
  %1235 = vadd.xlane.f32.xlu0 %v1234
  %v1236 = vpop.xlane.xlu0 %1235
  %v1237 = vsel %vm47, %v1223, 0.0
  %1238 = vadd.xlane.f32.xlu0 %v1237
  %v1239 = vpop.xlane.xlu0 %1238
  %v1240 = vsel %vm47, %v1228, 0.0
  %1241 = vadd.xlane.f32.xlu0 %v1240
  %v1242 = vpop.xlane.xlu0 %1241
  %v1243 = vsel %vm1026, %v1231, 0.0
  %1244 = vadd.xlane.f32.xlu0 %v1243
  %v1245 = vpop.xlane.xlu0 %1244
  %v1246 = vmul.f32 %v1236, %v99
  %v1247 = vmul.f32 %v1239, %v99
  %v1248 = vmul.f32 %v1242, %v99
  %v1249 = vmul.f32 %v1245, %v99
  %v1250 = vsub.f32 %v1220, %v1246
  %v1251 = vsub.f32 %v1223, %v1247
  %v1252 = vsub.f32 %v1228, %v1248
  %v1253 = vsub.f32 %v1231, %v1249
  %v1254 = vmul.f32 %v1250, %v1250
  %v1255 = vmul.f32 %v1251, %v1251
  %v1256 = vmul.f32 %v1252, %v1252
  %v1257 = vmul.f32 %v1253, %v1253
  %v1258 = vsel %vm47, %v1254, 0.0
  %1259 = vadd.xlane.f32.xlu0 %v1258
  %v1260 = vpop.xlane.xlu0 %1259
  %v1261 = vsel %vm47, %v1255, 0.0
  %1262 = vadd.xlane.f32.xlu0 %v1261
  %v1263 = vpop.xlane.xlu0 %1262
  %v1264 = vsel %vm47, %v1256, 0.0
  %1265 = vadd.xlane.f32.xlu0 %v1264
  %v1266 = vpop.xlane.xlu0 %1265
  %v1267 = vsel %vm1026, %v1257, 0.0
  %1268 = vadd.xlane.f32.xlu0 %v1267
  %v1269 = vpop.xlane.xlu0 %1268
  %v1270 = vmul.f32 %v1260, %v99
  %v1271 = vmul.f32 %v1263, %v99
  %v1272 = vmul.f32 %v1266, %v99
  %v1273 = vmul.f32 %v1269, %v99
  %v1274 = vadd.f32 %v1270, 1e-05
  %v1275 = vadd.f32 %v1271, 1e-05
  %v1276 = vadd.f32 %v1272, 1e-05
  %v1277 = vadd.f32 %v1273, 1e-05
  %v1278 = vrsqrt.pop %v1274
  %v1279 = vrsqrt.pop %v1275
  %v1280 = vrsqrt.pop %v1276
  %v1281 = vrsqrt.pop %v1277
  %v1282 = vmul.f32 %v1250, %v1278
  %v1283 = vmul.f32 %v1251, %v1279
  %v1284 = vmul.f32 %v1252, %v1280
  %v1285 = vmul.f32 %v1253, %v1281
  %v1286 = vlaneseq
  %v1287 = vshrl.u32 %v1286, 7
  %v1288 = vsub.s32 4, %v1287
  %v1289 = vrot.slane %v24, %v1288
  %v1290 = vmul.f32 %v1282, %v1289
  %v1291 = vmul.f32 %v1283, %v1289
  %v1292 = vmul.f32 %v1284, %v1289
  %v1293 = vmul.f32 %v1285, %v1289
  %v1294 = vlaneseq
  %v1295 = vshrl.u32 %v1294, 7
  %v1296 = vsub.s32 5, %v1295
  %v1297 = vrot.slane %v24, %v1296
  %v1298 = vadd.f32 %v1290, %v1297
  %v1299 = vadd.f32 %v1291, %v1297
  %v1300 = vadd.f32 %v1292, %v1297
  %v1301 = vadd.f32 %v1293, %v1297
  %v1302 = vmax.f32 %v1298, 0.0
  %v1303 = vmax.f32 %v1299, 0.0
  %v1304 = vmax.f32 %v1300, 0.0
  %v1305 = vmax.f32 %v1301, 0.0
  %v1306 = vld [vmem:[%s1 + $0x90] sm:$0xf]
  %v1307 = vld [vmem:[%s1 + $0x94] sm:$0xf]
  %v1308 = vld [vmem:[%s1 + $0x98] sm:$0xf]
  %v1309 = vld [vmem:[%s1 + $0x9c] sm:$0xf]
  %v1310 = vld [vmem:[%s1 + $0xa0] sm:$0xf]
  %v1311 = vld [vmem:[%s1 + $0xa4] sm:$0xf]
  %v1312 = vld [vmem:[%s1 + $0xa8] sm:$0xf]
  %v1313 = vld [vmem:[%s1 + $0xac] sm:$0xf]
  %v1314 = vpack.c.bf16 %v1303, %v1302
  %v1315 = vpack.c.bf16 %v1305, %v1304
  %v1320 = vunpack.c.l.b16 %v1306
  %v1321 = vunpack.c.l.b16 %v1307
  %v1322 = vunpack.c.l.b16 %v1308
  %v1323 = vunpack.c.l.b16 %v1309
  %v1324 = vpack.c.b16 %v1321, %v1320
  %v1325 = vpack.c.b16 %v1323, %v1322
  %v1329 = vsel %vm47, %v1314, 0
  %v1332 = vsel %vm47, %v1315, 0
  %1334 = vmatprep.subr.bf16.mxu0 0
  %1335 = vmatpush1.bf16.msra.mxu0 %v1324
  %1336 = vmatprep.subr.bf16.mxu0 0
  %1337 = vmatpush1.bf16.msra.mxu0 %v1325
  %1338 = vmatprep.subr.bf16.mxu0 0
  %1339 = vmatpush1.bf16.msra.mxu0 0
  %1340 = vmatprep.subr.bf16.mxu0 0
  %1341 = vmatpush1.bf16.msra.mxu0 0
  %1342 = vmatprep.subr.bf16.mxu0 0
  %1343 = vmatpush1.bf16.msra.mxu0 0
  %1344 = vmatprep.subr.bf16.mxu0 0
  %1345 = vmatpush1.bf16.msra.mxu0 0
  %1346 = vmatprep.subr.bf16.mxu0 0
  %1347 = vmatpush1.bf16.msra.mxu0 0
  %1348 = vmatprep.subr.bf16.mxu0 0
  %1349 = vmatpush1.bf16.msra.mxu0 0
  %1350 = vmatprep.subr.bf16.mxu0 0
  %1351 = vmatpush1.bf16.msra.mxu0 0
  %1352 = vmatprep.subr.bf16.mxu0 0
  %1353 = vmatpush1.bf16.msra.mxu0 0
  %1354 = vmatprep.subr.bf16.mxu0 0
  %1355 = vmatpush1.bf16.msra.mxu0 0
  %1356 = vmatprep.subr.bf16.mxu0 0
  %1357 = vmatpush1.bf16.msra.mxu0 0
  %1358 = vmatprep.subr.bf16.mxu0 0
  %1359 = vmatpush1.bf16.msra.mxu0 0
  %1360 = vmatprep.subr.bf16.mxu0 0
  %1361 = vmatpush1.bf16.msra.mxu0 0
  %1362 = vmatprep.subr.bf16.mxu0 0
  %1363 = vmatpush1.bf16.msra.mxu0 0
  %1364 = vmatprep.subr.bf16.mxu0 0
  %1365 = vmatpush1.bf16.msra.mxu0 0
  %1366 = vmatprep.mubr.bf16.mxu0 0
  %1367 = vmatmul.mubr.bf16.gmra.mrb[0].mxu0 %v1329
  %v1368 = vpop.f32.mrb[0].mxu0
  %v1369 = vadd.f32 0.0, %v1368
  %v1370 = vpop.f32.mrb[0].mxu0
  %v1371 = vpop.f32.mrb[0].mxu0
  %v1372 = vadd.f32 0.0, %v1371
  %v1373 = vpop.f32.mrb[0].mxu0
  %1374 = vmatprep.mubr.bf16.mxu0 0
  %1375 = vmatmul.mubr.bf16.gmra.mrb[0].mxu0 %v1332
  %v1376 = vpop.f32.mrb[0].mxu0
  %v1377 = vadd.f32 0.0, %v1376
  %v1378 = vpop.f32.mrb[0].mxu0
  %v1379 = vpop.f32.mrb[0].mxu0
  %v1380 = vadd.f32 0.0, %v1379
  %v1381 = vpop.f32.mrb[0].mxu0
  %1382 = vdwg.mxu0
  %v1383 = vsel %vm47, %v1369, 0.0
  %1384 = vadd.xlane.f32.xlu0 %v1383
  %v1385 = vpop.xlane.xlu0 %1384
  %v1386 = vsel %vm47, %v1372, 0.0
  %1387 = vadd.xlane.f32.xlu0 %v1386
  %v1388 = vpop.xlane.xlu0 %1387
  %v1389 = vsel %vm47, %v1377, 0.0
  %1390 = vadd.xlane.f32.xlu0 %v1389
  %v1391 = vpop.xlane.xlu0 %1390
  %v1392 = vsel %vm1026, %v1380, 0.0
  %1393 = vadd.xlane.f32.xlu0 %v1392
  %v1394 = vpop.xlane.xlu0 %1393
  %v1395 = vmul.f32 %v1385, %v99
  %v1396 = vmul.f32 %v1388, %v99
  %v1397 = vmul.f32 %v1391, %v99
  %v1398 = vmul.f32 %v1394, %v99
  %v1399 = vsub.f32 %v1369, %v1395
  %v1400 = vsub.f32 %v1372, %v1396
  %v1401 = vsub.f32 %v1377, %v1397
  %v1402 = vsub.f32 %v1380, %v1398
  %v1403 = vmul.f32 %v1399, %v1399
  %v1404 = vmul.f32 %v1400, %v1400
  %v1405 = vmul.f32 %v1401, %v1401
  %v1406 = vmul.f32 %v1402, %v1402
  %v1407 = vsel %vm47, %v1403, 0.0
  %1408 = vadd.xlane.f32.xlu0 %v1407
  %v1409 = vpop.xlane.xlu0 %1408
  %v1410 = vsel %vm47, %v1404, 0.0
  %1411 = vadd.xlane.f32.xlu0 %v1410
  %v1412 = vpop.xlane.xlu0 %1411
  %v1413 = vsel %vm47, %v1405, 0.0
  %1414 = vadd.xlane.f32.xlu0 %v1413
  %v1415 = vpop.xlane.xlu0 %1414
  %v1416 = vsel %vm1026, %v1406, 0.0
  %1417 = vadd.xlane.f32.xlu0 %v1416
  %v1418 = vpop.xlane.xlu0 %1417
  %v1419 = vmul.f32 %v1409, %v99
  %v1420 = vmul.f32 %v1412, %v99
  %v1421 = vmul.f32 %v1415, %v99
  %v1422 = vmul.f32 %v1418, %v99
  %v1423 = vadd.f32 %v1419, 1e-05
  %v1424 = vadd.f32 %v1420, 1e-05
  %v1425 = vadd.f32 %v1421, 1e-05
  %v1426 = vadd.f32 %v1422, 1e-05
  %v1427 = vrsqrt.pop %v1423
  %v1428 = vrsqrt.pop %v1424
  %v1429 = vrsqrt.pop %v1425
  %v1430 = vrsqrt.pop %v1426
  %v1431 = vmul.f32 %v1399, %v1427
  %v1432 = vmul.f32 %v1400, %v1428
  %v1433 = vmul.f32 %v1401, %v1429
  %v1434 = vmul.f32 %v1402, %v1430
  %v1435 = vlaneseq
  %v1436 = vshrl.u32 %v1435, 7
  %v1437 = vsub.s32 6, %v1436
  %v1438 = vrot.slane %v24, %v1437
  %v1439 = vmul.f32 %v1431, %v1438
  %v1440 = vmul.f32 %v1432, %v1438
  %v1441 = vmul.f32 %v1433, %v1438
  %v1442 = vmul.f32 %v1434, %v1438
  %v1443 = vlaneseq
  %v1444 = vshrl.u32 %v1443, 7
  %v1445 = vsub.s32 7, %v1444
  %v1446 = vrot.slane %v24, %v1445
  %v1447 = vadd.f32 %v1439, %v1446
  %v1448 = vadd.f32 %v1440, %v1446
  %v1449 = vadd.f32 %v1441, %v1446
  %v1450 = vadd.f32 %v1442, %v1446
  %v1451 = vmax.f32 %v1447, 0.0
  %v1452 = vmax.f32 %v1448, 0.0
  %v1453 = vmax.f32 %v1449, 0.0
  %v1454 = vmax.f32 %v1450, 0.0
  %v1455 = vpack.c.bf16 %v1452, %v1451
  %v1456 = vpack.c.bf16 %v1454, %v1453
  %v1461 = vunpack.c.l.b16 %v1310
  %v1462 = vunpack.c.l.b16 %v1311
  %v1463 = vunpack.c.l.b16 %v1312
  %v1464 = vunpack.c.l.b16 %v1313
  %v1465 = vpack.c.b16 %v1462, %v1461
  %v1466 = vpack.c.b16 %v1464, %v1463
  %v1470 = vsel %vm47, %v1455, 0
  %v1473 = vsel %vm47, %v1456, 0
  %1475 = vmatprep.subr.bf16.mxu0 0
  %1476 = vmatpush1.bf16.msra.mxu0 %v1465
  %1477 = vmatprep.subr.bf16.mxu0 0
  %1478 = vmatpush1.bf16.msra.mxu0 %v1466
  %1479 = vmatprep.subr.bf16.mxu0 0
  %1480 = vmatpush1.bf16.msra.mxu0 0
  %1481 = vmatprep.subr.bf16.mxu0 0
  %1482 = vmatpush1.bf16.msra.mxu0 0
  %1483 = vmatprep.subr.bf16.mxu0 0
  %1484 = vmatpush1.bf16.msra.mxu0 0
  %1485 = vmatprep.subr.bf16.mxu0 0
  %1486 = vmatpush1.bf16.msra.mxu0 0
  %1487 = vmatprep.subr.bf16.mxu0 0
  %1488 = vmatpush1.bf16.msra.mxu0 0
  %1489 = vmatprep.subr.bf16.mxu0 0
  %1490 = vmatpush1.bf16.msra.mxu0 0
  %1491 = vmatprep.subr.bf16.mxu0 0
  %1492 = vmatpush1.bf16.msra.mxu0 0
  %1493 = vmatprep.subr.bf16.mxu0 0
  %1494 = vmatpush1.bf16.msra.mxu0 0
  %1495 = vmatprep.subr.bf16.mxu0 0
  %1496 = vmatpush1.bf16.msra.mxu0 0
  %1497 = vmatprep.subr.bf16.mxu0 0
  %1498 = vmatpush1.bf16.msra.mxu0 0
  %1499 = vmatprep.subr.bf16.mxu0 0
  %1500 = vmatpush1.bf16.msra.mxu0 0
  %1501 = vmatprep.subr.bf16.mxu0 0
  %1502 = vmatpush1.bf16.msra.mxu0 0
  %1503 = vmatprep.subr.bf16.mxu0 0
  %1504 = vmatpush1.bf16.msra.mxu0 0
  %1505 = vmatprep.subr.bf16.mxu0 0
  %1506 = vmatpush1.bf16.msra.mxu0 0
  %1507 = vmatprep.mubr.bf16.mxu0 0
  %1508 = vmatmul.mubr.bf16.gmra.mrb[0].mxu0 %v1470
  %v1509 = vpop.f32.mrb[0].mxu0
  %v1510 = vadd.f32 0.0, %v1509
  %v1511 = vpop.f32.mrb[0].mxu0
  %v1512 = vpop.f32.mrb[0].mxu0
  %v1513 = vadd.f32 0.0, %v1512
  %v1514 = vpop.f32.mrb[0].mxu0
  %1515 = vmatprep.mubr.bf16.mxu0 0
  %1516 = vmatmul.mubr.bf16.gmra.mrb[0].mxu0 %v1473
  %v1517 = vpop.f32.mrb[0].mxu0
  %v1518 = vadd.f32 0.0, %v1517
  %v1519 = vpop.f32.mrb[0].mxu0
  %v1520 = vpop.f32.mrb[0].mxu0
  %v1521 = vadd.f32 0.0, %v1520
  %v1522 = vpop.f32.mrb[0].mxu0
  %1523 = vdwg.mxu0
  %v1524 = vsel %vm47, %v1510, 0.0
  %1525 = vadd.xlane.f32.xlu0 %v1524
  %v1526 = vpop.xlane.xlu0 %1525
  %v1527 = vsel %vm47, %v1513, 0.0
  %1528 = vadd.xlane.f32.xlu0 %v1527
  %v1529 = vpop.xlane.xlu0 %1528
  %v1530 = vsel %vm47, %v1518, 0.0
  %1531 = vadd.xlane.f32.xlu0 %v1530
  %v1532 = vpop.xlane.xlu0 %1531
  %v1533 = vsel %vm1026, %v1521, 0.0
  %1534 = vadd.xlane.f32.xlu0 %v1533
  %v1535 = vpop.xlane.xlu0 %1534
  %v1536 = vmul.f32 %v1526, %v99
  %v1537 = vmul.f32 %v1529, %v99
  %v1538 = vmul.f32 %v1532, %v99
  %v1539 = vmul.f32 %v1535, %v99
  %v1540 = vsub.f32 %v1510, %v1536
  %v1541 = vsub.f32 %v1513, %v1537
  %v1542 = vsub.f32 %v1518, %v1538
  %v1543 = vsub.f32 %v1521, %v1539
  %v1544 = vmul.f32 %v1540, %v1540
  %v1545 = vmul.f32 %v1541, %v1541
  %v1546 = vmul.f32 %v1542, %v1542
  %v1547 = vmul.f32 %v1543, %v1543
  %v1548 = vsel %vm47, %v1544, 0.0
  %1549 = vadd.xlane.f32.xlu0 %v1548
  %v1550 = vpop.xlane.xlu0 %1549
  %v1551 = vsel %vm47, %v1545, 0.0
  %1552 = vadd.xlane.f32.xlu0 %v1551
  %v1553 = vpop.xlane.xlu0 %1552
  %v1554 = vsel %vm47, %v1546, 0.0
  %1555 = vadd.xlane.f32.xlu0 %v1554
  %v1556 = vpop.xlane.xlu0 %1555
  %v1557 = vsel %vm1026, %v1547, 0.0
  %1558 = vadd.xlane.f32.xlu0 %v1557
  %v1559 = vpop.xlane.xlu0 %1558
  %v1560 = vmul.f32 %v1550, %v99
  %v1561 = vmul.f32 %v1553, %v99
  %v1562 = vmul.f32 %v1556, %v99
  %v1563 = vmul.f32 %v1559, %v99
  %v1564 = vadd.f32 %v1560, 1e-05
  %v1565 = vadd.f32 %v1561, 1e-05
  %v1566 = vadd.f32 %v1562, 1e-05
  %v1567 = vadd.f32 %v1563, 1e-05
  %v1568 = vrsqrt.pop %v1564
  %v1569 = vrsqrt.pop %v1565
  %v1570 = vrsqrt.pop %v1566
  %v1571 = vrsqrt.pop %v1567
  %v1572 = vmul.f32 %v1540, %v1568
  %v1573 = vmul.f32 %v1541, %v1569
  %v1574 = vmul.f32 %v1542, %v1570
  %v1575 = vmul.f32 %v1543, %v1571
  %v1576 = vlaneseq
  %v1577 = vshrl.u32 %v1576, 7
  %v1578 = vsub.s32 0, %v1577
  %v1579 = vrot.slane %v25, %v1578
  %v1580 = vmul.f32 %v1572, %v1579
  %v1581 = vmul.f32 %v1573, %v1579
  %v1582 = vmul.f32 %v1574, %v1579
  %v1583 = vmul.f32 %v1575, %v1579
  %v1584 = vlaneseq
  %v1585 = vshrl.u32 %v1584, 7
  %v1586 = vsub.s32 1, %v1585
  %v1587 = vrot.slane %v25, %v1586
  %v1588 = vadd.f32 %v1580, %v1587
  %v1589 = vadd.f32 %v1581, %v1587
  %v1590 = vadd.f32 %v1582, %v1587
  %v1591 = vadd.f32 %v1583, %v1587
  %v1592 = vadd.f32 %v1588, %v1302
  %v1593 = vadd.f32 %v1589, %v1303
  %v1594 = vadd.f32 %v1590, %v1304
  %v1595 = vadd.f32 %v1591, %v1305
  %v1596 = vmax.f32 %v1592, 0.0
  %v1597 = vmax.f32 %v1593, 0.0
  %v1598 = vmax.f32 %v1594, 0.0
  %v1599 = vmax.f32 %v1595, 0.0
  %v1600 = vlaneseq
  %v1601 = vshrl.u32 %v1600, 7
  %v1602 = vsub.s32 2, %v1601
  %v1603 = vrot.slane %v25, %v1602
  %v1604 = vmul.f32 %v1596, %v1603
  %v1605 = vmul.f32 %v1597, %v1603
  %v1606 = vmul.f32 %v1598, %v1603
  %v1607 = vmul.f32 %v1599, %v1603
  %v1608 = vsel %vm47, %v1604, 0.0
  %1609 = vadd.xlane.f32.xlu0 %v1608
  %v1610 = vpop.xlane.xlu0 %1609
  %v1611 = vsel %vm47, %v1605, 0.0
  %1612 = vadd.xlane.f32.xlu0 %v1611
  %v1613 = vpop.xlane.xlu0 %1612
  %v1614 = vsel %vm47, %v1606, 0.0
  %1615 = vadd.xlane.f32.xlu0 %v1614
  %v1616 = vpop.xlane.xlu0 %1615
  %v1617 = vsel %vm1026, %v1607, 0.0
  %1618 = vadd.xlane.f32.xlu0 %v1617
  %v1619 = vpop.xlane.xlu0 %1618
  %v1620 = vlaneseq
  %v1621 = vshrl.u32 %v1620, 7
  %v1622 = vsub.s32 3, %v1621
  %v1623 = vrot.slane %v25, %v1622
  %v1624 = vadd.f32 %v1610, %v1623
  %v1625 = vadd.f32 %v1613, %v1623
  %v1626 = vadd.f32 %v1616, %v1623
  %v1627 = vadd.f32 %v1619, %v1623
  %vm1628 = vcmask 7168
  %1629 = vst.msk [vmem:[%s5] sm:$0xff] %vm1628, %v1624
  %1630 = vst.msk [vmem:[%s5 + $0x8] sm:$0xff] %vm1628, %v1625
  %1631 = vst.msk [vmem:[%s5 + $0x10] sm:$0xff] %vm1628, %v1626
  %vm1632 = vcmask 5120
  %1633 = vst.msk [vmem:[%s5 + $0x18] sm:$0x3f] %vm1632, %v1627
  // Predicated region
  $region18: #{tpu_custom_call.1} parent=0 // pred_check
    _
  $region19: #{tpu_custom_call.1} parent=0 // pred_check_branch
    %1635 = sbr.rel (0) target = $region21
  $region20: #{tpu_custom_call.1} parent=0 // pred_region
    _
  $region21: #{tpu_custom_call.1} parent=0 // pred_fallthru
    _
  // Predicated region
  $region22: #{tpu_custom_call.1} parent=0 // pred_check
    _
  $region23: #{tpu_custom_call.1} parent=0 // pred_check_branch
    %1637 = sbr.rel (0) target = $region25
  $region24: #{tpu_custom_call.1} parent=0 // pred_region
    _
  $region25: #{tpu_custom_call.1} parent=0 // pred_fallthru
    _
  // Predicated region
  $region26: #{tpu_custom_call.1} parent=0 // pred_check
    _
  $region27: #{tpu_custom_call.1} parent=0 // pred_check_branch
    %1639 = sbr.rel (0) target = $region29
  $region28: #{tpu_custom_call.1} parent=0 // pred_region
    _
  $region29: #{tpu_custom_call.1} parent=0 // pred_fallthru
    _
  // Predicated region
  $region30: #{tpu_custom_call.1} parent=0 // pred_check
    _
  $region31: #{tpu_custom_call.1} parent=0 // pred_check_branch
    %1641 = sbr.rel (0) target = $region33
  $region32: #{tpu_custom_call.1} parent=0 // pred_region
    _
  $region33: #{tpu_custom_call.1} parent=0 // pred_fallthru
    _

</llo_original>
